<compile_context>
chip_gen: v7x
topology: tpu7x:2x2x1
jax: 0.10.0
libtpu: 0.0.40
codegen_flags: <defaults>
</compile_context>

<pallas_src>
import jax
import jax.numpy as jnp
import numpy as np
from jax.experimental import pallas as pl
from jax.experimental.pallas import tpu as pltpu

BN_EPS = 1e-5
NEG_SLOPE = 0.01
LANE = 128


def _leaky_relu(y):
    return jnp.where(y >= 0, y, NEG_SLOPE * y)


def _ru(n, m=LANE):
    return ((n + m - 1) // m) * m


# ------------------------------ fused kernel ------------------------------- #

def _fused_cvae_kernel(
    # batch-tiled inputs
    x_ref, eps_ref,
    # VMEM-resident (constant index_map) packed parameters
    w1_ref, b1_ref,            # fc1 (BN1 folded), cols padded to Hp
    rb1w_ref, rb1b_ref,        # resblock1: [fc(BN folded) | downsample], halves padded
    rb2w_ref, rb2b_ref,        # resblock2
    wz_ref, bz_ref,            # [mu | logvar] heads, halves padded to zp
    w3_ref, b3_ref,            # fc3 (BN3 folded) | classifier column group (128 lanes)
    rb3w_ref, rb3b_ref,        # resblock3
    rb4w_ref, rb4b_ref,        # resblock4
    w4_ref, b4_ref,            # fc4
    # batch-tiled outputs
    recon_ref, lat_ref,
):
    f32 = jnp.float32

    def dense(h, w_ref, b_ref):
        # bf16 x bf16 on the MXU, f32 accumulate, f32 bias add.
        return jnp.dot(h.astype(w_ref.dtype), w_ref[...],
                       preferred_element_type=f32) + b_ref[...]

    def resblock(h, w_ref, b_ref):
        # One (Din, 2*Dout_pad) matmul for fc(BN-folded) and downsample together.
        # Both halves are 128-lane aligned by construction.
        y = dense(h, w_ref, b_ref)
        half = y.shape[1] // 2
        # eval-mode Dropout(0.3) between activation and residual add is identity.
        return _leaky_relu(y[:, :half]) + y[:, half:]

    x = x_ref[...]

    # ------------------------------ encoder -------------------------------- #
    h = _leaky_relu(dense(x, w1_ref, b1_ref))        # fc1 + folded bn1 + act
    h = resblock(h, rb1w_ref, rb1b_ref)              # (TB, h2p)
    h = resblock(h, rb2w_ref, rb2b_ref)              # (TB, h4p)

    # ----------------------- latent + reparameterize ----------------------- #
    zp = eps_ref.shape[1]
    ml = dense(h, wz_ref, bz_ref)                    # (TB, 2*zp) = [mu_pad | logvar_pad]
    mu = ml[:, :zp]
    logvar = ml[:, zp:]
    z = mu + eps_ref[...] * jnp.exp(0.5 * logvar)    # padded lanes stay exactly 0

    # ------------------- decoder (+ classifier fused in fc3) ---------------- #
    y3 = dense(z, w3_ref, b3_ref)                    # (TB, h4p + 128)
    h4p = y3.shape[1] - LANE
    logit_tile = y3[:, h4p:]                         # lane 0 = classifier logit
    d = _leaky_relu(y3[:, :h4p])                     # fc3 + folded bn3 + act
    d = resblock(d, rb3w_ref, rb3b_ref)              # (TB, h2p)
    d = resblock(d, rb4w_ref, rb4b_ref)              # (TB, Hp)
    recon_ref[...] = dense(d, w4_ref, b4_ref)        # (TB, input_dim)

    # -------- lane-dense latent slab: aligned direct stores, no concat ------ #
    lat_ref[:, :2 * zp] = ml                         # [mu_pad | logvar_pad]
    lat_ref[:, 2 * zp:3 * zp] = z                    # z_pad
    lat_ref[:, 3 * zp:] = logit_tile                 # logit in lane 0


# ------------------------------ pallas wrapper ------------------------------ #

def cvae_dnn_liner_forward(x, eps, fp, *, batch_tile=256):
    """x: (B, input_dim) f32, eps: (B, z_dim) f32, fp: packed/folded params."""
    B, input_dim = x.shape
    z_dim = eps.shape[1]
    zp = fp["wz"].shape[1] // 2
    lat_w = 3 * zp + LANE

    # Batch tiling: rows are independent in eval mode, so zero-pad freely.
    tb = _ru(min(B, batch_tile), 8)
    Bp = _ru(B, tb)
    nb = Bp // tb
    x_p = jnp.pad(x.astype(jnp.float32), ((0, Bp - B), (0, 0)))
    eps_p = jnp.pad(eps.astype(jnp.float32), ((0, Bp - B), (0, zp - z_dim)))

    vmem = pltpu.MemorySpace.VMEM
    weight_keys = ("w1", "b1", "rb1_w", "rb1_b", "rb2_w", "rb2_b",
                   "wz", "bz", "w3", "b3", "rb3_w", "rb3_b",
                   "rb4_w", "rb4_b", "w4", "b4")
    weights = [fp[k] for k in weight_keys]

    def tile_spec(width):
        return pl.BlockSpec((tb, width), lambda i: (i, 0), memory_space=vmem)

    def resident_spec(arr):
        # Constant index_map: fetched once, VMEM-resident across batch tiles.
        # TODO(synk): on v7x (64 MiB VMEM) consider pipeline_mode=pl.Buffered(1)
        # on these specs to guarantee single-buffered resident weights.
        return pl.BlockSpec(arr.shape, lambda i: (0, 0), memory_space=vmem)

    in_specs = [tile_spec(input_dim), tile_spec(zp)] + [resident_spec(w) for w in weights]
    out_specs = (tile_spec(input_dim), tile_spec(lat_w))

    # ----- explicit VMEM budget (weights + double-buffered IO tiles + acts) ----- #
    def nbytes(a):
        return int(a.size) * a.dtype.itemsize

    Hp = fp["w1"].shape[1]
    h2p = fp["rb1_w"].shape[1] // 2
    h4p = fp["rb2_w"].shape[1] // 2
    weight_bytes = sum(nbytes(w) for w in weights)
    io_tile_bytes = 4 * tb * (2 * input_dim + zp + lat_w)
    act_bytes = 4 * tb * (2 * Hp + 2 * h2p + 2 * h4p + 2 * zp + (h4p + LANE) + input_dim)
    vmem_limit = 2 * weight_bytes + 2 * io_tile_bytes + 2 * act_bytes
    vmem_limit = min(max(vmem_limit, 32 * 1024 * 1024), 128 * 1024 * 1024)

    flops = 2 * Bp * sum(int(w.size) for w in weights if w.shape[0] > 1)
    bytes_accessed = weight_bytes + 4 * Bp * (2 * input_dim + zp + lat_w)
    cost = pl.CostEstimate(flops=flops, transcendentals=Bp * zp,
                           bytes_accessed=bytes_accessed)

    recon_p, lat = pl.pallas_call(
        _fused_cvae_kernel,
        grid=(nb,),
        in_specs=in_specs,
        out_specs=out_specs,
        out_shape=(
            jax.ShapeDtypeStruct((Bp, input_dim), jnp.float32),
            jax.ShapeDtypeStruct((Bp, lat_w), jnp.float32),
        ),
        compiler_params=pltpu.CompilerParams(
            dimension_semantics=("parallel",),
            vmem_limit_bytes=vmem_limit,
        ),
        cost_estimate=cost,
    )(x_p, eps_p, *weights)

    recon_x = recon_p[:B]
    mu = lat[:B, 0:z_dim]
    logvar = lat[:B, zp:zp + z_dim]
    z = lat[:B, 2 * zp:2 * zp + z_dim]
    class_logits = lat[:B, 3 * zp:3 * zp + 1]
    return recon_x, class_logits, mu, logvar, z


# ------------------------------ parameter init ------------------------------ #

def init_linear_params(key, din, dout):
    kw, kb = jax.random.split(key)
    bound = 1.0 / float(np.sqrt(din))
    w = jax.random.uniform(kw, (din, dout), jnp.float32, -bound, bound)
    b = jax.random.uniform(kb, (1, dout), jnp.float32, -bound, bound)
    return w, b


def init_bn_params(key, dout):
    # Non-trivial "trained" running stats so BN folding is actually exercised.
    kg, kb, km, kv = jax.random.split(key, 4)
    gamma = 1.0 + 0.1 * jax.random.normal(kg, (dout,), jnp.float32)
    beta = 0.1 * jax.random.normal(kb, (dout,), jnp.float32)
    mean = 0.1 * jax.random.normal(km, (dout,), jnp.float32)
    var = jnp.abs(1.0 + 0.1 * jax.random.normal(kv, (dout,), jnp.float32))
    return gamma, beta, mean, var


def init_raw_params(key, input_dim, hidden_dim, z_dim):
    h2, h4 = hidden_dim // 2, hidden_dim // 4
    keys = jax.random.split(key, 20)
    p = {}
    # encoder
    p["fc1"] = init_linear_params(keys[0], input_dim, hidden_dim)
    p["bn1"] = init_bn_params(keys[1], hidden_dim)
    p["rb1_fc"] = init_linear_params(keys[2], hidden_dim, h2)
    p["rb1_bn"] = init_bn_params(keys[3], h2)
    p["rb1_ds"] = init_linear_params(keys[4], hidden_dim, h2)
    p["rb2_fc"] = init_linear_params(keys[5], h2, h4)
    p["rb2_bn"] = init_bn_params(keys[6], h4)
    p["rb2_ds"] = init_linear_params(keys[7], h2, h4)
    p["fc21"] = init_linear_params(keys[8], h4, z_dim)
    p["fc22"] = init_linear_params(keys[9], h4, z_dim)
    # decoder
    p["fc3"] = init_linear_params(keys[10], z_dim, h4)
    p["bn3"] = init_bn_params(keys[11], h4)
    p["rb3_fc"] = init_linear_params(keys[12], h4, h2)
    p["rb3_bn"] = init_bn_params(keys[13], h2)
    p["rb3_ds"] = init_linear_params(keys[14], h4, h2)
    p["rb4_fc"] = init_linear_params(keys[15], h2, hidden_dim)
    p["rb4_bn"] = init_bn_params(keys[16], hidden_dim)
    p["rb4_ds"] = init_linear_params(keys[17], h2, hidden_dim)
    p["fc4"] = init_linear_params(keys[18], hidden_dim, input_dim)
    # classifier head (xavier_uniform weight, default bias)
    kcw, kcb = jax.random.split(keys[19])
    xb = float(np.sqrt(6.0 / (z_dim + 1)))
    clf_w = jax.random.uniform(kcw, (z_dim, 1), jnp.float32, -xb, xb)
    bb = 1.0 / float(np.sqrt(z_dim))
    clf_b = jax.random.uniform(kcb, (1, 1), jnp.float32, -bb, bb)
    p["clf"] = (clf_w, clf_b)
    return p


# --------------------------- parameter packing ------------------------------ #

def _fold_bn(w, b, bn):
    """Fold eval-mode BatchNorm1d into the preceding Linear (W:(in,out), b:(1,out))."""
    gamma, beta, mean, var = bn
    scale = gamma * jax.lax.rsqrt(var + BN_EPS)                  # (out,)
    w2 = w * scale[None, :]
    b2 = (b - mean[None, :]) * scale[None, :] + beta[None, :]
    return w2, b2


def _pad2(w, b, rows, cols):
    """Zero-pad (in,out) weight to (rows, cols) and (1,out) bias to (1, cols)."""
    w = jnp.pad(w, ((0, rows - w.shape[0]), (0, cols - w.shape[1])))
    b = jnp.pad(b, ((0, 0), (0, cols - b.shape[1])))
    return w, b


def pack_fused_params(p, weight_dtype=jnp.bfloat16):
    """BN-folded, 128-lane-aligned, bf16-cast parameters for the fused kernel."""
    input_dim, H = p["fc1"][0].shape
    h2 = p["rb1_fc"][0].shape[1]
    h4 = p["rb2_fc"][0].shape[1]
    z = p["fc21"][0].shape[1]
    Hp, h2p, h4p, zp = _ru(H), _ru(h2), _ru(h4), _ru(z)

    fp = {}

    # fc1 + bn1 (cols padded to Hp)
    w, b = _fold_bn(*p["fc1"], p["bn1"])
    w, b = _pad2(w, b, input_dim, Hp)
    fp["w1"], fp["b1"] = w.astype(weight_dtype), b

    # resblocks: [fc(BN folded) | downsample], both halves padded to Dout_pad
    rb_dims = {"rb1": (Hp, h2p), "rb2": (h2p, h4p), "rb3": (h4p, h2p), "rb4": (h2p, Hp)}
    for name, (din_p, dout_p) in rb_dims.items():
        wfc, bfc = _fold_bn(*p[f"{name}_fc"], p[f"{name}_bn"])
        wfc, bfc = _pad2(wfc, bfc, din_p, dout_p)
        wds, bds = _pad2(*p[f"{name}_ds"], din_p, dout_p)
        fp[f"{name}_w"] = jnp.concatenate([wfc, wds], axis=1).astype(weight_dtype)
        fp[f"{name}_b"] = jnp.concatenate([bfc, bds], axis=1)

    # latent heads [mu | logvar], each padded to zp columns (aligned split)
    w21, b21 = _pad2(*p["fc21"], h4p, zp)
    w22, b22 = _pad2(*p["fc22"], h4p, zp)
    fp["wz"] = jnp.concatenate([w21, w22], axis=1).astype(weight_dtype)
    fp["bz"] = jnp.concatenate([b21, b22], axis=1)

    # fc3 + bn3 with the classifier folded in as an extra 128-lane column group
    w3, b3 = _fold_bn(*p["fc3"], p["bn3"])
    w3, b3 = _pad2(w3, b3, zp, h4p)
    clf_w, clf_b = _pad2(*p["clf"], zp, LANE)
    fp["w3"] = jnp.concatenate([w3, clf_w], axis=1).astype(weight_dtype)
    fp["b3"] = jnp.concatenate([b3, clf_b], axis=1)

    # fc4 (rows padded to Hp)
    w4, b4 = p["fc4"]
    fp["w4"] = jnp.pad(w4, ((0, Hp - H), (0, 0))).astype(weight_dtype)
    fp["b4"] = b4
    return fp


# ---------------- pure-JAX mirror of the kernel (packed params) ------------- #

def packed_reference_forward(x, eps, fp):
    """Mirrors the fused kernel math exactly (same folded/padded bf16 params)."""
    f32 = jnp.float32
    zp = fp["wz"].shape[1] // 2
    z_dim = eps.shape[1]
    eps_p = jnp.pad(eps, ((0, 0), (0, zp - z_dim)))

    def dense(h, w, b):
        return jnp.dot(h.astype(w.dtype), w, preferred_element_type=f32) + b

    def res(h, w, b):
        y = dense(h, w, b)
        half = y.shape[1] // 2
        return _leaky_relu(y[:, :half]) + y[:, half:]

    h = _leaky_relu(dense(x, fp["w1"], fp["b1"]))
    h = res(h, fp["rb1_w"], fp["rb1_b"])
    h = res(h, fp["rb2_w"], fp["rb2_b"])
    ml = dense(h, fp["wz"], fp["bz"])
    mu, logvar = ml[:, :zp], ml[:, zp:]
    z = mu + eps_p * jnp.exp(0.5 * logvar)
    y3 = dense(z, fp["w3"], fp["b3"])
    h4p = y3.shape[1] - LANE
    logit = y3[:, h4p:h4p + 1]
    d = _leaky_relu(y3[:, :h4p])
    d = res(d, fp["rb3_w"], fp["rb3_b"])
    d = res(d, fp["rb4_w"], fp["rb4_b"])
    recon = dense(d, fp["w4"], fp["b4"])
    return recon, logit, mu[:, :z_dim], logvar[:, :z_dim], z[:, :z_dim]


# --------------------- pure-JAX reference (un-fused, f32) -------------------- #

def reference_forward(x, eps, p):
    hp = jax.lax.Precision.HIGHEST

    def lin(h, wb):
        w, b = wb
        return jnp.dot(h, w, precision=hp) + b

    def bn(y, bnp):
        gamma, beta, mean, var = bnp
        return (y - mean[None, :]) * jax.lax.rsqrt(var[None, :] + BN_EPS) \
            * gamma[None, :] + beta[None, :]

    def res(h, fc, bnp, ds):
        return _leaky_relu(bn(lin(h, fc), bnp)) + lin(h, ds)

    h = _leaky_relu(bn(lin(x, p["fc1"]), p["bn1"]))
    h = res(h, p["rb1_fc"], p["rb1_bn"], p["rb1_ds"])
    h = res(h, p["rb2_fc"], p["rb2_bn"], p["rb2_ds"])
    mu, logvar = lin(h, p["fc21"]), lin(h, p["fc22"])
    z = mu + eps * jnp.exp(0.5 * logvar)
    d = _leaky_relu(bn(lin(z, p["fc3"]), p["bn3"]))
    d = res(d, p["rb3_fc"], p["rb3_bn"], p["rb3_ds"])
    d = res(d, p["rb4_fc"], p["rb4_bn"], p["rb4_ds"])
    recon = lin(d, p["fc4"])
    logits = lin(z, p["clf"])
    return recon, logits, mu, logvar, z


# ----------------------------------- main ----------------------------------- #

if __name__ == "__main__":
    # Small shapes consistent with the module's architecture
    # (model defaults are input_dim=2560, hidden_dim=1280, z_dim=100).
    B = 8
    INPUT_DIM = 256
    HIDDEN_DIM = 128
    Z_DIM = 32

    key = jax.random.PRNGKey(0)
    k_params, k_x, k_eps = jax.random.split(key, 3)

    raw_params = init_raw_params(k_params, INPUT_DIM, HIDDEN_DIM, Z_DIM)
    fused_params = pack_fused_params(raw_params)

    x = jax.random.normal(k_x, (B, INPUT_DIM), jnp.float32)
    eps = jax.random.normal(k_eps, (B, Z_DIM), jnp.float32)   # reparam noise

    fwd = jax.jit(cvae_dnn_liner_forward)
    outs = fwd(x, eps, fused_params)
    jax.block_until_ready(outs)
    recon_x, class_logits, mu, logvar, z = outs

    # shape & sanity checks
    assert recon_x.shape == (B, INPUT_DIM)
    assert class_logits.shape == (B, 1)
    assert mu.shape == (B, Z_DIM)
    assert logvar.shape == (B, Z_DIM)
    assert z.shape == (B, Z_DIM)
    assert all(bool(jnp.all(jnp.isfinite(a)))
               for a in (recon_x, class_logits, mu, logvar, z))

    # 1) kernel mechanics check: pure-JAX mirror using the SAME packed bf16 params
    pref = packed_reference_forward(x, eps, fused_params)
    for got, want in zip(outs, pref):
        np.testing.assert_allclose(np.asarray(got), np.asarray(want),
                                   rtol=2e-3, atol=2e-3)

    # 2) end-to-end fidelity vs. the un-fused / un-folded f32 reference
    #    (loose tolerance accounts for bf16 weight/activation quantization)
    ref = reference_forward(x, eps, raw_params)
    for got, want in zip(outs, ref):
        np.testing.assert_allclose(np.asarray(got), np.asarray(want),
                                   rtol=1e-1, atol=1e-1)

    print("KERNEL_OK")
</pallas_src>

<mosaic_0001>
module attributes {stable_mosaic.version = 11 : i64} {
  func.func @_fused_cvae_kernel(%arg0: i32, %arg1: memref<8x256xf32, #tpu.memory_space<vmem>>, %arg2: memref<8x128xf32, #tpu.memory_space<vmem>>, %arg3: memref<256x128xbf16, #tpu.memory_space<vmem>>, %arg4: memref<1x128xf32, #tpu.memory_space<vmem>>, %arg5: memref<128x256xbf16, #tpu.memory_space<vmem>>, %arg6: memref<1x256xf32, #tpu.memory_space<vmem>>, %arg7: memref<128x256xbf16, #tpu.memory_space<vmem>>, %arg8: memref<1x256xf32, #tpu.memory_space<vmem>>, %arg9: memref<128x256xbf16, #tpu.memory_space<vmem>>, %arg10: memref<1x256xf32, #tpu.memory_space<vmem>>, %arg11: memref<128x256xbf16, #tpu.memory_space<vmem>>, %arg12: memref<1x256xf32, #tpu.memory_space<vmem>>, %arg13: memref<128x256xbf16, #tpu.memory_space<vmem>>, %arg14: memref<1x256xf32, #tpu.memory_space<vmem>>, %arg15: memref<128x256xbf16, #tpu.memory_space<vmem>>, %arg16: memref<1x256xf32, #tpu.memory_space<vmem>>, %arg17: memref<128x256xbf16, #tpu.memory_space<vmem>>, %arg18: memref<1x256xf32, #tpu.memory_space<vmem>>, %arg19: memref<8x256xf32, #tpu.memory_space<vmem>>, %arg20: memref<8x512xf32, #tpu.memory_space<vmem>>) attributes {dimension_semantics = [#tpu.dimension_semantics<parallel>], iteration_bounds = array<i64: 1>, scalar_prefetch = 0 : i64, scratch_operands = 0 : i64, tpu.core_type = #tpu.core_type<tc>, window_params = [{transform_indices = @transform_0, window_bounds = array<i64: 8, 256>}, {transform_indices = @transform_1, window_bounds = array<i64: 8, 128>}, {pipeline_mode = #tpu.pipeline_mode<synchronous>, transform_indices = @transform_2, window_bounds = array<i64: 256, 128>}, {pipeline_mode = #tpu.pipeline_mode<synchronous>, transform_indices = @transform_3, window_bounds = array<i64: 1, 128>}, {pipeline_mode = #tpu.pipeline_mode<synchronous>, transform_indices = @transform_4, window_bounds = array<i64: 128, 256>}, {pipeline_mode = #tpu.pipeline_mode<synchronous>, transform_indices = @transform_5, window_bounds = array<i64: 1, 256>}, {pipeline_mode = #tpu.pipeline_mode<synchronous>, transform_indices = @transform_6, window_bounds = array<i64: 128, 256>}, {pipeline_mode = #tpu.pipeline_mode<synchronous>, transform_indices = @transform_7, window_bounds = array<i64: 1, 256>}, {pipeline_mode = #tpu.pipeline_mode<synchronous>, transform_indices = @transform_8, window_bounds = array<i64: 128, 256>}, {pipeline_mode = #tpu.pipeline_mode<synchronous>, transform_indices = @transform_9, window_bounds = array<i64: 1, 256>}, {pipeline_mode = #tpu.pipeline_mode<synchronous>, transform_indices = @transform_10, window_bounds = array<i64: 128, 256>}, {pipeline_mode = #tpu.pipeline_mode<synchronous>, transform_indices = @transform_11, window_bounds = array<i64: 1, 256>}, {pipeline_mode = #tpu.pipeline_mode<synchronous>, transform_indices = @transform_12, window_bounds = array<i64: 128, 256>}, {pipeline_mode = #tpu.pipeline_mode<synchronous>, transform_indices = @transform_13, window_bounds = array<i64: 1, 256>}, {pipeline_mode = #tpu.pipeline_mode<synchronous>, transform_indices = @transform_14, window_bounds = array<i64: 128, 256>}, {pipeline_mode = #tpu.pipeline_mode<synchronous>, transform_indices = @transform_15, window_bounds = array<i64: 1, 256>}, {pipeline_mode = #tpu.pipeline_mode<synchronous>, transform_indices = @transform_16, window_bounds = array<i64: 128, 256>}, {pipeline_mode = #tpu.pipeline_mode<synchronous>, transform_indices = @transform_17, window_bounds = array<i64: 1, 256>}, {transform_indices = @transform_18, window_bounds = array<i64: 8, 256>}, {transform_indices = @transform_19, window_bounds = array<i64: 8, 512>}]} {
    %c0 = arith.constant 0 : index
    %c0_0 = arith.constant 0 : index
    %0 = vector.load %arg1[%c0, %c0_0] : memref<8x256xf32, #tpu.memory_space<vmem>>, vector<8x256xf32>
    %1 = arith.truncf %0 : vector<8x256xf32> to vector<8x256xbf16>
    %c0_1 = arith.constant 0 : index
    %c0_2 = arith.constant 0 : index
    %2 = vector.load %arg3[%c0_1, %c0_2] : memref<256x128xbf16, #tpu.memory_space<vmem>>, vector<256x128xbf16>
    %cst = arith.constant dense<0.000000e+00> : vector<8x128xf32>
    %3 = tpu.matmul %1, %2, %cst {dimension_numbers = #tpu.dot_dimension_numbers<[1], [0], [0], [1], [0, 0, 1, 1], [], []>} : vector<8x256xbf16>, vector<256x128xbf16>, vector<8x128xf32> -> vector<8x128xf32>
    %c0_3 = arith.constant 0 : index
    %c0_4 = arith.constant 0 : index
    %4 = vector.load %arg4[%c0_3, %c0_4] : memref<1x128xf32, #tpu.memory_space<vmem>>, vector<1x128xf32>
    %5 = vector.broadcast %4 : vector<1x128xf32> to vector<8x128xf32>
    %6 = arith.addf %3, %5 : vector<8x128xf32>
    %cst_5 = arith.constant 0.000000e+00 : f32
    %7 = vector.broadcast %cst_5 : f32 to vector<8x128xf32>
    %8 = arith.cmpf oge, %6, %7 : vector<8x128xf32>
    %cst_6 = arith.constant 0.00999999977 : f32
    %9 = vector.broadcast %cst_6 : f32 to vector<8x128xf32>
    %10 = arith.mulf %9, %6 : vector<8x128xf32>
    %11 = arith.select %8, %6, %10 : vector<8x128xi1>, vector<8x128xf32>
    %12 = arith.truncf %11 : vector<8x128xf32> to vector<8x128xbf16>
    %c0_7 = arith.constant 0 : index
    %c0_8 = arith.constant 0 : index
    %13 = vector.load %arg5[%c0_7, %c0_8] : memref<128x256xbf16, #tpu.memory_space<vmem>>, vector<128x256xbf16>
    %cst_9 = arith.constant dense<0.000000e+00> : vector<8x256xf32>
    %14 = tpu.matmul %12, %13, %cst_9 {dimension_numbers = #tpu.dot_dimension_numbers<[1], [0], [0], [1], [0, 0, 1, 1], [], []>} : vector<8x128xbf16>, vector<128x256xbf16>, vector<8x256xf32> -> vector<8x256xf32>
    %c0_10 = arith.constant 0 : index
    %c0_11 = arith.constant 0 : index
    %15 = vector.load %arg6[%c0_10, %c0_11] : memref<1x256xf32, #tpu.memory_space<vmem>>, vector<1x256xf32>
    %16 = vector.broadcast %15 : vector<1x256xf32> to vector<8x256xf32>
    %17 = arith.addf %14, %16 : vector<8x256xf32>
    %18 = vector.extract_strided_slice %17 {offsets = [0, 0], sizes = [8, 128], strides = [1, 1]} : vector<8x256xf32> to vector<8x128xf32>
    %cst_12 = arith.constant 0.000000e+00 : f32
    %19 = vector.broadcast %cst_12 : f32 to vector<8x128xf32>
    %20 = arith.cmpf oge, %18, %19 : vector<8x128xf32>
    %cst_13 = arith.constant 0.00999999977 : f32
    %21 = vector.broadcast %cst_13 : f32 to vector<8x128xf32>
    %22 = arith.mulf %21, %18 : vector<8x128xf32>
    %23 = arith.select %20, %18, %22 : vector<8x128xi1>, vector<8x128xf32>
    %24 = vector.extract_strided_slice %17 {offsets = [0, 128], sizes = [8, 128], strides = [1, 1]} : vector<8x256xf32> to vector<8x128xf32>
    %25 = arith.addf %23, %24 : vector<8x128xf32>
    %26 = arith.truncf %25 : vector<8x128xf32> to vector<8x128xbf16>
    %c0_14 = arith.constant 0 : index
    %c0_15 = arith.constant 0 : index
    %27 = vector.load %arg7[%c0_14, %c0_15] : memref<128x256xbf16, #tpu.memory_space<vmem>>, vector<128x256xbf16>
    %cst_16 = arith.constant dense<0.000000e+00> : vector<8x256xf32>
    %28 = tpu.matmul %26, %27, %cst_16 {dimension_numbers = #tpu.dot_dimension_numbers<[1], [0], [0], [1], [0, 0, 1, 1], [], []>} : vector<8x128xbf16>, vector<128x256xbf16>, vector<8x256xf32> -> vector<8x256xf32>
    %c0_17 = arith.constant 0 : index
    %c0_18 = arith.constant 0 : index
    %29 = vector.load %arg8[%c0_17, %c0_18] : memref<1x256xf32, #tpu.memory_space<vmem>>, vector<1x256xf32>
    %30 = vector.broadcast %29 : vector<1x256xf32> to vector<8x256xf32>
    %31 = arith.addf %28, %30 : vector<8x256xf32>
    %32 = vector.extract_strided_slice %31 {offsets = [0, 0], sizes = [8, 128], strides = [1, 1]} : vector<8x256xf32> to vector<8x128xf32>
    %cst_19 = arith.constant 0.000000e+00 : f32
    %33 = vector.broadcast %cst_19 : f32 to vector<8x128xf32>
    %34 = arith.cmpf oge, %32, %33 : vector<8x128xf32>
    %cst_20 = arith.constant 0.00999999977 : f32
    %35 = vector.broadcast %cst_20 : f32 to vector<8x128xf32>
    %36 = arith.mulf %35, %32 : vector<8x128xf32>
    %37 = arith.select %34, %32, %36 : vector<8x128xi1>, vector<8x128xf32>
    %38 = vector.extract_strided_slice %31 {offsets = [0, 128], sizes = [8, 128], strides = [1, 1]} : vector<8x256xf32> to vector<8x128xf32>
    %39 = arith.addf %37, %38 : vector<8x128xf32>
    %40 = arith.truncf %39 : vector<8x128xf32> to vector<8x128xbf16>
    %c0_21 = arith.constant 0 : index
    %c0_22 = arith.constant 0 : index
    %41 = vector.load %arg9[%c0_21, %c0_22] : memref<128x256xbf16, #tpu.memory_space<vmem>>, vector<128x256xbf16>
    %cst_23 = arith.constant dense<0.000000e+00> : vector<8x256xf32>
    %42 = tpu.matmul %40, %41, %cst_23 {dimension_numbers = #tpu.dot_dimension_numbers<[1], [0], [0], [1], [0, 0, 1, 1], [], []>} : vector<8x128xbf16>, vector<128x256xbf16>, vector<8x256xf32> -> vector<8x256xf32>
    %c0_24 = arith.constant 0 : index
    %c0_25 = arith.constant 0 : index
    %43 = vector.load %arg10[%c0_24, %c0_25] : memref<1x256xf32, #tpu.memory_space<vmem>>, vector<1x256xf32>
    %44 = vector.broadcast %43 : vector<1x256xf32> to vector<8x256xf32>
    %45 = arith.addf %42, %44 : vector<8x256xf32>
    %46 = vector.extract_strided_slice %45 {offsets = [0, 0], sizes = [8, 128], strides = [1, 1]} : vector<8x256xf32> to vector<8x128xf32>
    %47 = vector.extract_strided_slice %45 {offsets = [0, 128], sizes = [8, 128], strides = [1, 1]} : vector<8x256xf32> to vector<8x128xf32>
    %c0_26 = arith.constant 0 : index
    %c0_27 = arith.constant 0 : index
    %48 = vector.load %arg2[%c0_26, %c0_27] : memref<8x128xf32, #tpu.memory_space<vmem>>, vector<8x128xf32>
    %cst_28 = arith.constant 5.000000e-01 : f32
    %49 = vector.broadcast %cst_28 : f32 to vector<8x128xf32>
    %50 = arith.mulf %49, %47 : vector<8x128xf32>
    %51 = math.exp %50 : vector<8x128xf32>
    %52 = arith.mulf %48, %51 : vector<8x128xf32>
    %53 = arith.addf %46, %52 : vector<8x128xf32>
    %54 = arith.truncf %53 : vector<8x128xf32> to vector<8x128xbf16>
    %c0_29 = arith.constant 0 : index
    %c0_30 = arith.constant 0 : index
    %55 = vector.load %arg11[%c0_29, %c0_30] : memref<128x256xbf16, #tpu.memory_space<vmem>>, vector<128x256xbf16>
    %cst_31 = arith.constant dense<0.000000e+00> : vector<8x256xf32>
    %56 = tpu.matmul %54, %55, %cst_31 {dimension_numbers = #tpu.dot_dimension_numbers<[1], [0], [0], [1], [0, 0, 1, 1], [], []>} : vector<8x128xbf16>, vector<128x256xbf16>, vector<8x256xf32> -> vector<8x256xf32>
    %c0_32 = arith.constant 0 : index
    %c0_33 = arith.constant 0 : index
    %57 = vector.load %arg12[%c0_32, %c0_33] : memref<1x256xf32, #tpu.memory_space<vmem>>, vector<1x256xf32>
    %58 = vector.broadcast %57 : vector<1x256xf32> to vector<8x256xf32>
    %59 = arith.addf %56, %58 : vector<8x256xf32>
    %60 = vector.extract_strided_slice %59 {offsets = [0, 128], sizes = [8, 128], strides = [1, 1]} : vector<8x256xf32> to vector<8x128xf32>
    %61 = vector.extract_strided_slice %59 {offsets = [0, 0], sizes = [8, 128], strides = [1, 1]} : vector<8x256xf32> to vector<8x128xf32>
    %cst_34 = arith.constant 0.000000e+00 : f32
    %62 = vector.broadcast %cst_34 : f32 to vector<8x128xf32>
    %63 = arith.cmpf oge, %61, %62 : vector<8x128xf32>
    %cst_35 = arith.constant 0.00999999977 : f32
    %64 = vector.broadcast %cst_35 : f32 to vector<8x128xf32>
    %65 = arith.mulf %64, %61 : vector<8x128xf32>
    %66 = arith.select %63, %61, %65 : vector<8x128xi1>, vector<8x128xf32>
    %67 = arith.truncf %66 : vector<8x128xf32> to vector<8x128xbf16>
    %c0_36 = arith.constant 0 : index
    %c0_37 = arith.constant 0 : index
    %68 = vector.load %arg13[%c0_36, %c0_37] : memref<128x256xbf16, #tpu.memory_space<vmem>>, vector<128x256xbf16>
    %cst_38 = arith.constant dense<0.000000e+00> : vector<8x256xf32>
    %69 = tpu.matmul %67, %68, %cst_38 {dimension_numbers = #tpu.dot_dimension_numbers<[1], [0], [0], [1], [0, 0, 1, 1], [], []>} : vector<8x128xbf16>, vector<128x256xbf16>, vector<8x256xf32> -> vector<8x256xf32>
    %c0_39 = arith.constant 0 : index
    %c0_40 = arith.constant 0 : index
    %70 = vector.load %arg14[%c0_39, %c0_40] : memref<1x256xf32, #tpu.memory_space<vmem>>, vector<1x256xf32>
    %71 = vector.broadcast %70 : vector<1x256xf32> to vector<8x256xf32>
    %72 = arith.addf %69, %71 : vector<8x256xf32>
    %73 = vector.extract_strided_slice %72 {offsets = [0, 0], sizes = [8, 128], strides = [1, 1]} : vector<8x256xf32> to vector<8x128xf32>
    %cst_41 = arith.constant 0.000000e+00 : f32
    %74 = vector.broadcast %cst_41 : f32 to vector<8x128xf32>
    %75 = arith.cmpf oge, %73, %74 : vector<8x128xf32>
    %cst_42 = arith.constant 0.00999999977 : f32
    %76 = vector.broadcast %cst_42 : f32 to vector<8x128xf32>
    %77 = arith.mulf %76, %73 : vector<8x128xf32>
    %78 = arith.select %75, %73, %77 : vector<8x128xi1>, vector<8x128xf32>
    %79 = vector.extract_strided_slice %72 {offsets = [0, 128], sizes = [8, 128], strides = [1, 1]} : vector<8x256xf32> to vector<8x128xf32>
    %80 = arith.addf %78, %79 : vector<8x128xf32>
    %81 = arith.truncf %80 : vector<8x128xf32> to vector<8x128xbf16>
    %c0_43 = arith.constant 0 : index
    %c0_44 = arith.constant 0 : index
    %82 = vector.load %arg15[%c0_43, %c0_44] : memref<128x256xbf16, #tpu.memory_space<vmem>>, vector<128x256xbf16>
    %cst_45 = arith.constant dense<0.000000e+00> : vector<8x256xf32>
    %83 = tpu.matmul %81, %82, %cst_45 {dimension_numbers = #tpu.dot_dimension_numbers<[1], [0], [0], [1], [0, 0, 1, 1], [], []>} : vector<8x128xbf16>, vector<128x256xbf16>, vector<8x256xf32> -> vector<8x256xf32>
    %c0_46 = arith.constant 0 : index
    %c0_47 = arith.constant 0 : index
    %84 = vector.load %arg16[%c0_46, %c0_47] : memref<1x256xf32, #tpu.memory_space<vmem>>, vector<1x256xf32>
    %85 = vector.broadcast %84 : vector<1x256xf32> to vector<8x256xf32>
    %86 = arith.addf %83, %85 : vector<8x256xf32>
    %87 = vector.extract_strided_slice %86 {offsets = [0, 0], sizes = [8, 128], strides = [1, 1]} : vector<8x256xf32> to vector<8x128xf32>
    %cst_48 = arith.constant 0.000000e+00 : f32
    %88 = vector.broadcast %cst_48 : f32 to vector<8x128xf32>
    %89 = arith.cmpf oge, %87, %88 : vector<8x128xf32>
    %cst_49 = arith.constant 0.00999999977 : f32
    %90 = vector.broadcast %cst_49 : f32 to vector<8x128xf32>
    %91 = arith.mulf %90, %87 : vector<8x128xf32>
    %92 = arith.select %89, %87, %91 : vector<8x128xi1>, vector<8x128xf32>
    %93 = vector.extract_strided_slice %86 {offsets = [0, 128], sizes = [8, 128], strides = [1, 1]} : vector<8x256xf32> to vector<8x128xf32>
    %94 = arith.addf %92, %93 : vector<8x128xf32>
    %95 = arith.truncf %94 : vector<8x128xf32> to vector<8x128xbf16>
    %c0_50 = arith.constant 0 : index
    %c0_51 = arith.constant 0 : index
    %96 = vector.load %arg17[%c0_50, %c0_51] : memref<128x256xbf16, #tpu.memory_space<vmem>>, vector<128x256xbf16>
    %cst_52 = arith.constant dense<0.000000e+00> : vector<8x256xf32>
    %97 = tpu.matmul %95, %96, %cst_52 {dimension_numbers = #tpu.dot_dimension_numbers<[1], [0], [0], [1], [0, 0, 1, 1], [], []>} : vector<8x128xbf16>, vector<128x256xbf16>, vector<8x256xf32> -> vector<8x256xf32>
    %c0_53 = arith.constant 0 : index
    %c0_54 = arith.constant 0 : index
    %98 = vector.load %arg18[%c0_53, %c0_54] : memref<1x256xf32, #tpu.memory_space<vmem>>, vector<1x256xf32>
    %99 = vector.broadcast %98 : vector<1x256xf32> to vector<8x256xf32>
    %100 = arith.addf %97, %99 : vector<8x256xf32>
    %c0_55 = arith.constant 0 : index
    %c0_56 = arith.constant 0 : index
    %101 = vector.load %arg19[%c0_55, %c0_56] : memref<8x256xf32, #tpu.memory_space<vmem>>, vector<8x256xf32>
    tpu.vector_store %arg19[%c0_55, %c0_56], %100 {strides = array<i32>} : memref<8x256xf32, #tpu.memory_space<vmem>>, vector<8x256xf32>,
    %c0_57 = arith.constant 0 : index
    %c0_58 = arith.constant 0 : index
    %102 = vector.load %arg20[%c0_57, %c0_58] : memref<8x512xf32, #tpu.memory_space<vmem>>, vector<8x256xf32>
    tpu.vector_store %arg20[%c0_57, %c0_58], %45 {strides = array<i32>} : memref<8x512xf32, #tpu.memory_space<vmem>>, vector<8x256xf32>,
    %c0_59 = arith.constant 0 : index
    %c256 = arith.constant 256 : index
    %103 = vector.load %arg20[%c0_59, %c256] : memref<8x512xf32, #tpu.memory_space<vmem>>, vector<8x128xf32>
    tpu.vector_store %arg20[%c0_59, %c256], %53 {strides = array<i32>} : memref<8x512xf32, #tpu.memory_space<vmem>>, vector<8x128xf32>,
    %c0_60 = arith.constant 0 : index
    %c384 = arith.constant 384 : index
    %104 = vector.load %arg20[%c0_60, %c384] : memref<8x512xf32, #tpu.memory_space<vmem>>, vector<8x128xf32>
    tpu.vector_store %arg20[%c0_60, %c384], %60 {strides = array<i32>} : memref<8x512xf32, #tpu.memory_space<vmem>>, vector<8x128xf32>,
    return
  }
  func.func @transform_0(%arg0: i32) -> (i32, i32) {
    %c0_i32 = arith.constant 0 : i32
    %c0_i32_0 = arith.constant 0 : i32
    return %arg0, %c0_i32 : i32, i32
  }
  func.func @transform_1(%arg0: i32) -> (i32, i32) {
    %c0_i32 = arith.constant 0 : i32
    %c0_i32_0 = arith.constant 0 : i32
    return %arg0, %c0_i32 : i32, i32
  }
  func.func @transform_2(%arg0: i32) -> (i32, i32) {
    %c0_i32 = arith.constant 0 : i32
    %c0_i32_0 = arith.constant 0 : i32
    %c0_i32_1 = arith.constant 0 : i32
    return %c0_i32, %c0_i32_0 : i32, i32
  }
  func.func @transform_3(%arg0: i32) -> (i32, i32) {
    %c0_i32 = arith.constant 0 : i32
    %c0_i32_0 = arith.constant 0 : i32
    %c0_i32_1 = arith.constant 0 : i32
    return %c0_i32, %c0_i32_0 : i32, i32
  }
  func.func @transform_4(%arg0: i32) -> (i32, i32) {
    %c0_i32 = arith.constant 0 : i32
    %c0_i32_0 = arith.constant 0 : i32
    %c0_i32_1 = arith.constant 0 : i32
    return %c0_i32, %c0_i32_0 : i32, i32
  }
  func.func @transform_5(%arg0: i32) -> (i32, i32) {
    %c0_i32 = arith.constant 0 : i32
    %c0_i32_0 = arith.constant 0 : i32
    %c0_i32_1 = arith.constant 0 : i32
    return %c0_i32, %c0_i32_0 : i32, i32
  }
  func.func @transform_6(%arg0: i32) -> (i32, i32) {
    %c0_i32 = arith.constant 0 : i32
    %c0_i32_0 = arith.constant 0 : i32
    %c0_i32_1 = arith.constant 0 : i32
    return %c0_i32, %c0_i32_0 : i32, i32
  }
  func.func @transform_7(%arg0: i32) -> (i32, i32) {
    %c0_i32 = arith.constant 0 : i32
    %c0_i32_0 = arith.constant 0 : i32
    %c0_i32_1 = arith.constant 0 : i32
    return %c0_i32, %c0_i32_0 : i32, i32
  }
  func.func @transform_8(%arg0: i32) -> (i32, i32) {
    %c0_i32 = arith.constant 0 : i32
    %c0_i32_0 = arith.constant 0 : i32
    %c0_i32_1 = arith.constant 0 : i32
    return %c0_i32, %c0_i32_0 : i32, i32
  }
  func.func @transform_9(%arg0: i32) -> (i32, i32) {
    %c0_i32 = arith.constant 0 : i32
    %c0_i32_0 = arith.constant 0 : i32
    %c0_i32_1 = arith.constant 0 : i32
    return %c0_i32, %c0_i32_0 : i32, i32
  }
  func.func @transform_10(%arg0: i32) -> (i32, i32) {
    %c0_i32 = arith.constant 0 : i32
    %c0_i32_0 = arith.constant 0 : i32
    %c0_i32_1 = arith.constant 0 : i32
    return %c0_i32, %c0_i32_0 : i32, i32
  }
  func.func @transform_11(%arg0: i32) -> (i32, i32) {
    %c0_i32 = arith.constant 0 : i32
    %c0_i32_0 = arith.constant 0 : i32
    %c0_i32_1 = arith.constant 0 : i32
    return %c0_i32, %c0_i32_0 : i32, i32
  }
  func.func @transform_12(%arg0: i32) -> (i32, i32) {
    %c0_i32 = arith.constant 0 : i32
    %c0_i32_0 = arith.constant 0 : i32
    %c0_i32_1 = arith.constant 0 : i32
    return %c0_i32, %c0_i32_0 : i32, i32
  }
  func.func @transform_13(%arg0: i32) -> (i32, i32) {
    %c0_i32 = arith.constant 0 : i32
    %c0_i32_0 = arith.constant 0 : i32
    %c0_i32_1 = arith.constant 0 : i32
    return %c0_i32, %c0_i32_0 : i32, i32
  }
  func.func @transform_14(%arg0: i32) -> (i32, i32) {
    %c0_i32 = arith.constant 0 : i32
    %c0_i32_0 = arith.constant 0 : i32
    %c0_i32_1 = arith.constant 0 : i32
    return %c0_i32, %c0_i32_0 : i32, i32
  }
  func.func @transform_15(%arg0: i32) -> (i32, i32) {
    %c0_i32 = arith.constant 0 : i32
    %c0_i32_0 = arith.constant 0 : i32
    %c0_i32_1 = arith.constant 0 : i32
    return %c0_i32, %c0_i32_0 : i32, i32
  }
  func.func @transform_16(%arg0: i32) -> (i32, i32) {
    %c0_i32 = arith.constant 0 : i32
    %c0_i32_0 = arith.constant 0 : i32
    %c0_i32_1 = arith.constant 0 : i32
    return %c0_i32, %c0_i32_0 : i32, i32
  }
  func.func @transform_17(%arg0: i32) -> (i32, i32) {
    %c0_i32 = arith.constant 0 : i32
    %c0_i32_0 = arith.constant 0 : i32
    %c0_i32_1 = arith.constant 0 : i32
    return %c0_i32, %c0_i32_0 : i32, i32
  }
  func.func @transform_18(%arg0: i32) -> (i32, i32) {
    %c0_i32 = arith.constant 0 : i32
    %c0_i32_0 = arith.constant 0 : i32
    return %arg0, %c0_i32 : i32, i32
  }
  func.func @transform_19(%arg0: i32) -> (i32, i32) {
    %c0_i32 = arith.constant 0 : i32
    %c0_i32_0 = arith.constant 0 : i32
    return %arg0, %c0_i32 : i32, i32
  }
}

</mosaic_0001>

<llo_original>
// kernel: cvae_dnn_liner_forward.1
$region0: #{cvae_dnn_liner_forward.1}
  #allocation0 [shape = 'u32[]', space=smem, size = 0x4, offset = 0x4, fixed_abs, tag = 'smem constant byte address 0x4 - core index']
  #allocation1 [shape = 'u32[144,128]{1,0:T(1,128)}', space=vmem, size = 0x12000, scoped, tag = 'internal scratch']
  %s0 = inlined_call_operand.vmem [shape: f32[8,256], index: 0, kind: input, shape index: {}]
  %s1 = inlined_call_operand.vmem [shape: f32[8,128], index: 1, kind: input, shape index: {}]
  %s2 = inlined_call_operand.hbm [shape: bf16[256,128], index: 2, kind: input, shape index: {}]
  %s3 = inlined_call_operand.vmem [shape: f32[1,128], index: 3, kind: input, shape index: {}]
  %s4 = inlined_call_operand.hbm [shape: bf16[128,256], index: 4, kind: input, shape index: {}]
  %s5 = inlined_call_operand.vmem [shape: f32[1,256], index: 5, kind: input, shape index: {}]
  %s6 = inlined_call_operand.hbm [shape: bf16[128,256], index: 6, kind: input, shape index: {}]
  %s7 = inlined_call_operand.vmem [shape: f32[1,256], index: 7, kind: input, shape index: {}]
  %s8 = inlined_call_operand.hbm [shape: bf16[128,256], index: 8, kind: input, shape index: {}]
  %s9 = inlined_call_operand.vmem [shape: f32[1,256], index: 9, kind: input, shape index: {}]
  %s10 = inlined_call_operand.hbm [shape: bf16[128,256], index: 10, kind: input, shape index: {}]
  %s11 = inlined_call_operand.vmem [shape: f32[1,256], index: 11, kind: input, shape index: {}]
  %s12 = inlined_call_operand.hbm [shape: bf16[128,256], index: 12, kind: input, shape index: {}]
  %s13 = inlined_call_operand.vmem [shape: f32[1,256], index: 13, kind: input, shape index: {}]
  %s14 = inlined_call_operand.hbm [shape: bf16[128,256], index: 14, kind: input, shape index: {}]
  %s15 = inlined_call_operand.hbm [shape: f32[1,256], index: 15, kind: input, shape index: {}]
  %s16 = inlined_call_operand.hbm [shape: bf16[128,256], index: 16, kind: input, shape index: {}]
  %s17 = inlined_call_operand.hbm [shape: f32[1,256], index: 17, kind: input, shape index: {}]
  %s18 = inlined_call_operand.hbm [shape: f32[8,256], index: 18, kind: output, shape index: {0}]
  %s19 = inlined_call_operand.vmem [shape: f32[8,512], index: 19, kind: output, shape index: {1}]
  %20 = xla_tuple %s18, %s19
  %s21 = sld [smem:[#allocation0]]
  $region130: #{cvae_dnn_liner_forward.1} parent=0
    _
  %s23 = ssub.s32 1, %s21
  %s24 = scalar_select 0, %s23, %s21
  $region1: #{cvae_dnn_liner_forward.1} parent=0
    #allocation2 [shape = 'u8[65536]{0}', space=vmem, size = 0x10000, scoped, tag = 'input window, operand 2, single buffered']
    #allocation3 [shape = 's32[1]{0}', space=sflag, size = 0x4, scoped, tag = 'scoped memory for cvae_dnn_liner_forward.1']
    #allocation4 [shape = 's32[1]{0}', space=sflag, size = 0x4, scoped, tag = 'scoped memory for cvae_dnn_liner_forward.1']
    #allocation5 [shape = 'u8[65536]{0}', space=vmem, size = 0x10000, scoped, tag = 'input window, operand 4, single buffered']
    #allocation6 [shape = 's32[1]{0}', space=sflag, size = 0x4, scoped, tag = 'scoped memory for cvae_dnn_liner_forward.1']
    #allocation7 [shape = 'u8[65536]{0}', space=vmem, size = 0x10000, scoped, tag = 'input window, operand 6, single buffered']
    #allocation8 [shape = 'u8[65536]{0}', space=vmem, size = 0x10000, scoped, tag = 'input window, operand 8, single buffered']
    #allocation9 [shape = 's32[1]{0}', space=sflag, size = 0x4, scoped, tag = 'scoped memory for cvae_dnn_liner_forward.1']
    #allocation10 [shape = 'u8[65536]{0}', space=vmem, size = 0x10000, scoped, tag = 'input window, operand 10, single buffered']
    #allocation11 [shape = 'u8[65536]{0}', space=vmem, size = 0x10000, scoped, tag = 'input window, operand 12, single buffered']
    #allocation12 [shape = 's32[1]{0}', space=sflag, size = 0x4, scoped, tag = 'scoped memory for cvae_dnn_liner_forward.1']
    #allocation13 [shape = 'u8[65536]{0}', space=vmem, size = 0x10000, scoped, tag = 'input window, operand 14, single buffered']
    #allocation14 [shape = 'u8[1024]{0}', space=vmem, size = 0x400, scoped, tag = 'input window, operand 15, single buffered']
    #allocation15 [shape = 's32[1]{0}', space=sflag, size = 0x4, scoped, tag = 'scoped memory for cvae_dnn_liner_forward.1']
    #allocation16 [shape = 'u8[65536]{0}', space=vmem, size = 0x10000, scoped, tag = 'input window, operand 16, single buffered']
    #allocation17 [shape = 'u8[1024]{0}', space=vmem, size = 0x400, scoped, tag = 'input window, operand 17, single buffered']
    #allocation18 [shape = 's32[1]{0}', space=sflag, size = 0x4, scoped, tag = 'scoped memory for cvae_dnn_liner_forward.1']
    #allocation19 [shape = 'u8[8192]{0}', space=vmem, size = 0x2000, scoped, tag = 'output window, operand 0, single buffered']
    %25 = vsyncpa [#allocation3], 0
    %26 = vsyncpa [#allocation6], 0
    %27 = vsyncpa [#allocation9], 0
    %28 = vsyncpa [#allocation12], 0
    %29 = vsyncpa [#allocation15], 0
    %30 = vsyncpa [#allocation18], 0
    %31 = vsyncpa [#allocation4], 0
    // Predicated region
    $region2: #{cvae_dnn_liner_forward.1} parent=1 // pred_check
      _
    $region3: #{cvae_dnn_liner_forward.1} parent=1 // pred_check_branch
      %33 = sbr.rel (0) target = $region5
    $region4: #{cvae_dnn_liner_forward.1} parent=1 // pred_region
      _
    $region5: #{cvae_dnn_liner_forward.1} parent=1 // pred_fallthru
      _
    // Predicated region
    $region6: #{cvae_dnn_liner_forward.1} parent=1 // pred_check
      _
    $region7: #{cvae_dnn_liner_forward.1} parent=1 // pred_check_branch
      %35 = sbr.rel (0) target = $region9
    $region8: #{cvae_dnn_liner_forward.1} parent=1 // pred_region
      _
    $region9: #{cvae_dnn_liner_forward.1} parent=1 // pred_fallthru
      _
    // Predicated region
    $region10: #{cvae_dnn_liner_forward.1} parent=1 // pred_check
      _
    $region11: #{cvae_dnn_liner_forward.1} parent=1 // pred_check_branch
      %37 = sbr.rel (0) target = $region13
    $region12: #{cvae_dnn_liner_forward.1} parent=1 // pred_region
      %s39 = ssub.s32 2048, 2048
      %40 = vsyncadd [#allocation3], %s39
      %s41 = sshll.u32 [#allocation2], 4
      %s42 = int_to_ptr.vmem [resolvable:$true] %s41
      %47 = dma.hbm_to_vmem [thread:$0]  %s2, 2048, %s42, [#allocation3], 64, 64, 4
    $region13: #{cvae_dnn_liner_forward.1} parent=1 // pred_fallthru
      _
    // Predicated region
    $region14: #{cvae_dnn_liner_forward.1} parent=1 // pred_check
      _
    $region15: #{cvae_dnn_liner_forward.1} parent=1 // pred_check_branch
      %49 = sbr.rel (0) target = $region17
    $region16: #{cvae_dnn_liner_forward.1} parent=1 // pred_region
      _
    $region17: #{cvae_dnn_liner_forward.1} parent=1 // pred_fallthru
      _
    // Predicated region
    $region18: #{cvae_dnn_liner_forward.1} parent=1 // pred_check
      _
    $region19: #{cvae_dnn_liner_forward.1} parent=1 // pred_check_branch
      %51 = sbr.rel (0) target = $region21
    $region20: #{cvae_dnn_liner_forward.1} parent=1 // pred_region
      %s53 = ssub.s32 2048, 2048
      %54 = vsyncadd [#allocation6], %s53
      %s55 = sshll.u32 [#allocation5], 4
      %s56 = int_to_ptr.vmem [resolvable:$true] %s55
      %61 = dma.hbm_to_vmem [thread:$0]  %s4, 2048, %s56, [#allocation6], 128, 128, 8
    $region21: #{cvae_dnn_liner_forward.1} parent=1 // pred_fallthru
      _
    // Predicated region
    $region22: #{cvae_dnn_liner_forward.1} parent=1 // pred_check
      _
    $region23: #{cvae_dnn_liner_forward.1} parent=1 // pred_check_branch
      %63 = sbr.rel (0) target = $region25
    $region24: #{cvae_dnn_liner_forward.1} parent=1 // pred_region
      _
    $region25: #{cvae_dnn_liner_forward.1} parent=1 // pred_fallthru
      _
    // Predicated region
    $region26: #{cvae_dnn_liner_forward.1} parent=1 // pred_check
      _
    $region27: #{cvae_dnn_liner_forward.1} parent=1 // pred_check_branch
      %65 = sbr.rel (0) target = $region29
    $region28: #{cvae_dnn_liner_forward.1} parent=1 // pred_region
      %s67 = ssub.s32 2048, 2048
      %68 = vsyncadd [#allocation6], %s67
      %s69 = sshll.u32 [#allocation7], 4
      %s70 = int_to_ptr.vmem [resolvable:$true] %s69
      %75 = dma.hbm_to_vmem [thread:$0]  %s6, 2048, %s70, [#allocation6], 128, 128, 8
    $region29: #{cvae_dnn_liner_forward.1} parent=1 // pred_fallthru
      _
    // Predicated region
    $region30: #{cvae_dnn_liner_forward.1} parent=1 // pred_check
      _
    $region31: #{cvae_dnn_liner_forward.1} parent=1 // pred_check_branch
      %77 = sbr.rel (0) target = $region33
    $region32: #{cvae_dnn_liner_forward.1} parent=1 // pred_region
      _
    $region33: #{cvae_dnn_liner_forward.1} parent=1 // pred_fallthru
      _
    // Predicated region
    $region34: #{cvae_dnn_liner_forward.1} parent=1 // pred_check
      _
    $region35: #{cvae_dnn_liner_forward.1} parent=1 // pred_check_branch
      %79 = sbr.rel (0) target = $region37
    $region36: #{cvae_dnn_liner_forward.1} parent=1 // pred_region
      %s81 = ssub.s32 2048, 2048
      %82 = vsyncadd [#allocation9], %s81
      %s83 = sshll.u32 [#allocation8], 4
      %s84 = int_to_ptr.vmem [resolvable:$true] %s83
      %89 = dma.hbm_to_vmem [thread:$0]  %s8, 2048, %s84, [#allocation9], 128, 128, 8
    $region37: #{cvae_dnn_liner_forward.1} parent=1 // pred_fallthru
      _
    // Predicated region
    $region38: #{cvae_dnn_liner_forward.1} parent=1 // pred_check
      _
    $region39: #{cvae_dnn_liner_forward.1} parent=1 // pred_check_branch
      %91 = sbr.rel (0) target = $region41
    $region40: #{cvae_dnn_liner_forward.1} parent=1 // pred_region
      _
    $region41: #{cvae_dnn_liner_forward.1} parent=1 // pred_fallthru
      _
    // Predicated region
    $region42: #{cvae_dnn_liner_forward.1} parent=1 // pred_check
      _
    $region43: #{cvae_dnn_liner_forward.1} parent=1 // pred_check_branch
      %93 = sbr.rel (0) target = $region45
    $region44: #{cvae_dnn_liner_forward.1} parent=1 // pred_region
      %s95 = ssub.s32 2048, 2048
      %96 = vsyncadd [#allocation9], %s95
      %s97 = sshll.u32 [#allocation10], 4
      %s98 = int_to_ptr.vmem [resolvable:$true] %s97
      %103 = dma.hbm_to_vmem [thread:$0]  %s10, 2048, %s98, [#allocation9], 128, 128, 8
    $region45: #{cvae_dnn_liner_forward.1} parent=1 // pred_fallthru
      _
    // Predicated region
    $region46: #{cvae_dnn_liner_forward.1} parent=1 // pred_check
      _
    $region47: #{cvae_dnn_liner_forward.1} parent=1 // pred_check_branch
      %105 = sbr.rel (0) target = $region49
    $region48: #{cvae_dnn_liner_forward.1} parent=1 // pred_region
      _
    $region49: #{cvae_dnn_liner_forward.1} parent=1 // pred_fallthru
      _
    // Predicated region
    $region50: #{cvae_dnn_liner_forward.1} parent=1 // pred_check
      _
    $region51: #{cvae_dnn_liner_forward.1} parent=1 // pred_check_branch
      %107 = sbr.rel (0) target = $region53
    $region52: #{cvae_dnn_liner_forward.1} parent=1 // pred_region
      %s109 = ssub.s32 2048, 2048
      %110 = vsyncadd [#allocation12], %s109
      %s111 = sshll.u32 [#allocation11], 4
      %s112 = int_to_ptr.vmem [resolvable:$true] %s111
      %117 = dma.hbm_to_vmem [thread:$0]  %s12, 2048, %s112, [#allocation12], 128, 128, 8
    $region53: #{cvae_dnn_liner_forward.1} parent=1 // pred_fallthru
      _
    // Predicated region
    $region54: #{cvae_dnn_liner_forward.1} parent=1 // pred_check
      _
    $region55: #{cvae_dnn_liner_forward.1} parent=1 // pred_check_branch
      %119 = sbr.rel (0) target = $region57
    $region56: #{cvae_dnn_liner_forward.1} parent=1 // pred_region
      _
    $region57: #{cvae_dnn_liner_forward.1} parent=1 // pred_fallthru
      _
    // Predicated region
    $region58: #{cvae_dnn_liner_forward.1} parent=1 // pred_check
      _
    $region59: #{cvae_dnn_liner_forward.1} parent=1 // pred_check_branch
      %121 = sbr.rel (0) target = $region61
    $region60: #{cvae_dnn_liner_forward.1} parent=1 // pred_region
      %s123 = ssub.s32 2048, 2048
      %124 = vsyncadd [#allocation12], %s123
      %s125 = sshll.u32 [#allocation13], 4
      %s126 = int_to_ptr.vmem [resolvable:$true] %s125
      %131 = dma.hbm_to_vmem [thread:$0]  %s14, 2048, %s126, [#allocation12], 128, 128, 8
    $region61: #{cvae_dnn_liner_forward.1} parent=1 // pred_fallthru
      _
    // Predicated region
    $region62: #{cvae_dnn_liner_forward.1} parent=1 // pred_check
      _
    $region63: #{cvae_dnn_liner_forward.1} parent=1 // pred_check_branch
      %133 = sbr.rel (0) target = $region65
    $region64: #{cvae_dnn_liner_forward.1} parent=1 // pred_region
      %s135 = ssub.s32 32, 32
      %136 = vsyncadd [#allocation15], %s135
      %s138 = sshll.u32 [#allocation14], 4
      %s139 = int_to_ptr.vmem [resolvable:$true] %s138
      %141 = dma.hbm_to_vmem [thread:$0]  %s15, 32, %s139, [#allocation15]
    $region65: #{cvae_dnn_liner_forward.1} parent=1 // pred_fallthru
      _
    // Predicated region
    $region66: #{cvae_dnn_liner_forward.1} parent=1 // pred_check
      _
    $region67: #{cvae_dnn_liner_forward.1} parent=1 // pred_check_branch
      %143 = sbr.rel (0) target = $region69
    $region68: #{cvae_dnn_liner_forward.1} parent=1 // pred_region
      %s145 = ssub.s32 2048, 2048
      %146 = vsyncadd [#allocation15], %s145
      %s147 = sshll.u32 [#allocation16], 4
      %s148 = int_to_ptr.vmem [resolvable:$true] %s147
      %153 = dma.hbm_to_vmem [thread:$0]  %s16, 2048, %s148, [#allocation15], 128, 128, 8
    $region69: #{cvae_dnn_liner_forward.1} parent=1 // pred_fallthru
      _
    // Predicated region
    $region70: #{cvae_dnn_liner_forward.1} parent=1 // pred_check
      _
    $region71: #{cvae_dnn_liner_forward.1} parent=1 // pred_check_branch
      %155 = sbr.rel (0) target = $region73
    $region72: #{cvae_dnn_liner_forward.1} parent=1 // pred_region
      %s157 = ssub.s32 32, 32
      %158 = vsyncadd [#allocation18], %s157
      %s160 = sshll.u32 [#allocation17], 4
      %s161 = int_to_ptr.vmem [resolvable:$true] %s160
      %163 = dma.hbm_to_vmem [thread:$0]  %s17, 32, %s161, [#allocation18]
    $region73: #{cvae_dnn_liner_forward.1} parent=1 // pred_fallthru
      _
    // Predicated region
    $region74: #{cvae_dnn_liner_forward.1} parent=1 // pred_check
      _
    $region75: #{cvae_dnn_liner_forward.1} parent=1 // pred_check_branch
      %165 = sbr.rel (0) target = $region77
    $region76: #{cvae_dnn_liner_forward.1} parent=1 // pred_region
      %166 = dma.done [#allocation3], 2048
    $region77: #{cvae_dnn_liner_forward.1} parent=1 // pred_fallthru
      _
    // Predicated region
    $region78: #{cvae_dnn_liner_forward.1} parent=1 // pred_check
      _
    $region79: #{cvae_dnn_liner_forward.1} parent=1 // pred_check_branch
      %168 = sbr.rel (0) target = $region81
    $region80: #{cvae_dnn_liner_forward.1} parent=1 // pred_region
      %169 = dma.done [#allocation6], 2048
    $region81: #{cvae_dnn_liner_forward.1} parent=1 // pred_fallthru
      _
    // Predicated region
    $region82: #{cvae_dnn_liner_forward.1} parent=1 // pred_check
      _
    $region83: #{cvae_dnn_liner_forward.1} parent=1 // pred_check_branch
      %171 = sbr.rel (0) target = $region85
    $region84: #{cvae_dnn_liner_forward.1} parent=1 // pred_region
      %172 = dma.done [#allocation6], 2048
    $region85: #{cvae_dnn_liner_forward.1} parent=1 // pred_fallthru
      _
    // Predicated region
    $region86: #{cvae_dnn_liner_forward.1} parent=1 // pred_check
      _
    $region87: #{cvae_dnn_liner_forward.1} parent=1 // pred_check_branch
      %174 = sbr.rel (0) target = $region89
    $region88: #{cvae_dnn_liner_forward.1} parent=1 // pred_region
      %175 = dma.done [#allocation9], 2048
    $region89: #{cvae_dnn_liner_forward.1} parent=1 // pred_fallthru
      _
    // Predicated region
    $region90: #{cvae_dnn_liner_forward.1} parent=1 // pred_check
      _
    $region91: #{cvae_dnn_liner_forward.1} parent=1 // pred_check_branch
      %177 = sbr.rel (0) target = $region93
    $region92: #{cvae_dnn_liner_forward.1} parent=1 // pred_region
      %178 = dma.done [#allocation9], 2048
    $region93: #{cvae_dnn_liner_forward.1} parent=1 // pred_fallthru
      _
    // Predicated region
    $region94: #{cvae_dnn_liner_forward.1} parent=1 // pred_check
      _
    $region95: #{cvae_dnn_liner_forward.1} parent=1 // pred_check_branch
      %180 = sbr.rel (0) target = $region97
    $region96: #{cvae_dnn_liner_forward.1} parent=1 // pred_region
      %181 = dma.done [#allocation12], 2048
    $region97: #{cvae_dnn_liner_forward.1} parent=1 // pred_fallthru
      _
    // Predicated region
    $region98: #{cvae_dnn_liner_forward.1} parent=1 // pred_check
      _
    $region99: #{cvae_dnn_liner_forward.1} parent=1 // pred_check_branch
      %183 = sbr.rel (0) target = $region101
    $region100: #{cvae_dnn_liner_forward.1} parent=1 // pred_region
      %184 = dma.done [#allocation12], 2048
    $region101: #{cvae_dnn_liner_forward.1} parent=1 // pred_fallthru
      _
    // Predicated region
    $region102: #{cvae_dnn_liner_forward.1} parent=1 // pred_check
      _
    $region103: #{cvae_dnn_liner_forward.1} parent=1 // pred_check_branch
      %186 = sbr.rel (0) target = $region105
    $region104: #{cvae_dnn_liner_forward.1} parent=1 // pred_region
      %187 = dma.done [#allocation15], 32
    $region105: #{cvae_dnn_liner_forward.1} parent=1 // pred_fallthru
      _
    // Predicated region
    $region106: #{cvae_dnn_liner_forward.1} parent=1 // pred_check
      _
    $region107: #{cvae_dnn_liner_forward.1} parent=1 // pred_check_branch
      %189 = sbr.rel (0) target = $region109
    $region108: #{cvae_dnn_liner_forward.1} parent=1 // pred_region
      %190 = dma.done [#allocation15], 2048
    $region109: #{cvae_dnn_liner_forward.1} parent=1 // pred_fallthru
      _
    // Predicated region
    $region110: #{cvae_dnn_liner_forward.1} parent=1 // pred_check
      _
    $region111: #{cvae_dnn_liner_forward.1} parent=1 // pred_check_branch
      %192 = sbr.rel (0) target = $region113
    $region112: #{cvae_dnn_liner_forward.1} parent=1 // pred_region
      %193 = dma.done [#allocation18], 32
    $region113: #{cvae_dnn_liner_forward.1} parent=1 // pred_fallthru
      _
    %v195 = vld [vmem:[%s0] sm:$0xff]
    %v196 = vld [vmem:[%s0 + $0x8] sm:$0xff]
    %v197 = vpack.c.bf16 %v195, %v195
    %v198 = vpack.c.bf16 %v196, %v196
    %v199 = vld [vmem:[#allocation2] sm:$0xf]
    %v200 = vld [vmem:[#allocation2 + $0x4] sm:$0xf]
    %v201 = vld [vmem:[#allocation2 + $0x8] sm:$0xf]
    %v202 = vld [vmem:[#allocation2 + $0xc] sm:$0xf]
    %v203 = vld [vmem:[#allocation2 + $0x10] sm:$0xf]
    %v204 = vld [vmem:[#allocation2 + $0x14] sm:$0xf]
    %v205 = vld [vmem:[#allocation2 + $0x18] sm:$0xf]
    %v206 = vld [vmem:[#allocation2 + $0x1c] sm:$0xf]
    %v207 = vld [vmem:[#allocation2 + $0x20] sm:$0xf]
    %v208 = vld [vmem:[#allocation2 + $0x24] sm:$0xf]
    %v209 = vld [vmem:[#allocation2 + $0x28] sm:$0xf]
    %v210 = vld [vmem:[#allocation2 + $0x2c] sm:$0xf]
    %v211 = vld [vmem:[#allocation2 + $0x30] sm:$0xf]
    %v212 = vld [vmem:[#allocation2 + $0x34] sm:$0xf]
    %v213 = vld [vmem:[#allocation2 + $0x38] sm:$0xf]
    %v214 = vld [vmem:[#allocation2 + $0x3c] sm:$0xf]
    %v215 = vld [vmem:[#allocation2 + $0x40] sm:$0xf]
    %v216 = vld [vmem:[#allocation2 + $0x44] sm:$0xf]
    %v217 = vld [vmem:[#allocation2 + $0x48] sm:$0xf]
    %v218 = vld [vmem:[#allocation2 + $0x4c] sm:$0xf]
    %v219 = vld [vmem:[#allocation2 + $0x50] sm:$0xf]
    %v220 = vld [vmem:[#allocation2 + $0x54] sm:$0xf]
    %v221 = vld [vmem:[#allocation2 + $0x58] sm:$0xf]
    %v222 = vld [vmem:[#allocation2 + $0x5c] sm:$0xf]
    %v223 = vld [vmem:[#allocation2 + $0x60] sm:$0xf]
    %v224 = vld [vmem:[#allocation2 + $0x64] sm:$0xf]
    %v225 = vld [vmem:[#allocation2 + $0x68] sm:$0xf]
    %v226 = vld [vmem:[#allocation2 + $0x6c] sm:$0xf]
    %v227 = vld [vmem:[#allocation2 + $0x70] sm:$0xf]
    %v228 = vld [vmem:[#allocation2 + $0x74] sm:$0xf]
    %v229 = vld [vmem:[#allocation2 + $0x78] sm:$0xf]
    %v230 = vld [vmem:[#allocation2 + $0x7c] sm:$0xf]
    %v231 = vld [vmem:[%s3] sm:$0x1]
    %v233 = vlaneseq
    %v234 = vshrl.u32 %v233, 7
    %v235 = vsub.s32 0, %v234
    %v236 = vrot.slane %v231, %v235
    %v270 = vunpack.c.l.b16 %v199
    %v271 = vunpack.c.l.b16 %v200
    %v272 = vunpack.c.l.b16 %v201
    %v273 = vunpack.c.l.b16 %v202
    %v274 = vunpack.c.l.b16 %v203
    %v275 = vunpack.c.l.b16 %v204
    %v276 = vunpack.c.l.b16 %v205
    %v277 = vunpack.c.l.b16 %v206
    %v278 = vunpack.c.l.b16 %v207
    %v279 = vunpack.c.l.b16 %v208
    %v280 = vunpack.c.l.b16 %v209
    %v281 = vunpack.c.l.b16 %v210
    %v282 = vunpack.c.l.b16 %v211
    %v283 = vunpack.c.l.b16 %v212
    %v284 = vunpack.c.l.b16 %v213
    %v285 = vunpack.c.l.b16 %v214
    %v286 = vunpack.c.l.b16 %v215
    %v287 = vunpack.c.l.b16 %v216
    %v288 = vunpack.c.l.b16 %v217
    %v289 = vunpack.c.l.b16 %v218
    %v290 = vunpack.c.l.b16 %v219
    %v291 = vunpack.c.l.b16 %v220
    %v292 = vunpack.c.l.b16 %v221
    %v293 = vunpack.c.l.b16 %v222
    %v294 = vunpack.c.l.b16 %v223
    %v295 = vunpack.c.l.b16 %v224
    %v296 = vunpack.c.l.b16 %v225
    %v297 = vunpack.c.l.b16 %v226
    %v298 = vunpack.c.l.b16 %v227
    %v299 = vunpack.c.l.b16 %v228
    %v300 = vunpack.c.l.b16 %v229
    %v301 = vunpack.c.l.b16 %v230
    %v302 = vpack.c.b16 %v271, %v270
    %v303 = vpack.c.b16 %v273, %v272
    %v304 = vpack.c.b16 %v275, %v274
    %v305 = vpack.c.b16 %v277, %v276
    %v306 = vpack.c.b16 %v279, %v278
    %v307 = vpack.c.b16 %v281, %v280
    %v308 = vpack.c.b16 %v283, %v282
    %v309 = vpack.c.b16 %v285, %v284
    %v310 = vpack.c.b16 %v287, %v286
    %v311 = vpack.c.b16 %v289, %v288
    %v312 = vpack.c.b16 %v291, %v290
    %v313 = vpack.c.b16 %v293, %v292
    %v314 = vpack.c.b16 %v295, %v294
    %v315 = vpack.c.b16 %v297, %v296
    %v316 = vpack.c.b16 %v299, %v298
    %v317 = vpack.c.b16 %v301, %v300
    %334 = vmatprep.subr.bf16.mxu0 0
    %335 = vmatpush1.bf16.msra.mxu0 %v302
    %336 = vmatprep.subr.bf16.mxu0 0
    %337 = vmatpush1.bf16.msra.mxu0 %v303
    %338 = vmatprep.subr.bf16.mxu0 0
    %339 = vmatpush1.bf16.msra.mxu0 %v304
    %340 = vmatprep.subr.bf16.mxu0 0
    %341 = vmatpush1.bf16.msra.mxu0 %v305
    %342 = vmatprep.subr.bf16.mxu0 0
    %343 = vmatpush1.bf16.msra.mxu0 %v306
    %344 = vmatprep.subr.bf16.mxu0 0
    %345 = vmatpush1.bf16.msra.mxu0 %v307
    %346 = vmatprep.subr.bf16.mxu0 0
    %347 = vmatpush1.bf16.msra.mxu0 %v308
    %348 = vmatprep.subr.bf16.mxu0 0
    %349 = vmatpush1.bf16.msra.mxu0 %v309
    %350 = vmatprep.subr.bf16.mxu0 0
    %351 = vmatpush1.bf16.msra.mxu0 %v310
    %352 = vmatprep.subr.bf16.mxu0 0
    %353 = vmatpush1.bf16.msra.mxu0 %v311
    %354 = vmatprep.subr.bf16.mxu0 0
    %355 = vmatpush1.bf16.msra.mxu0 %v312
    %356 = vmatprep.subr.bf16.mxu0 0
    %357 = vmatpush1.bf16.msra.mxu0 %v313
    %358 = vmatprep.subr.bf16.mxu0 0
    %359 = vmatpush1.bf16.msra.mxu0 %v314
    %360 = vmatprep.subr.bf16.mxu0 0
    %361 = vmatpush1.bf16.msra.mxu0 %v315
    %362 = vmatprep.subr.bf16.mxu0 0
    %363 = vmatpush1.bf16.msra.mxu0 %v316
    %364 = vmatprep.subr.bf16.mxu0 0
    %365 = vmatpush1.bf16.msra.mxu0 %v317
    %366 = vmatprep.mubr.bf16.mxu0 %v198
    %367 = vmatmul.mubr.bf16.gmra.mrb[0].mxu0 %v197
    %v368 = vpop.f32.mrb[0].mxu0
    %v369 = vadd.f32 %v236, %v368
    %v370 = vpop.f32.mrb[0].mxu0
    %v371 = vpop.f32.mrb[0].mxu0
    %v372 = vpop.f32.mrb[0].mxu0
    %373 = vdwg.mxu0
    %vm374 = vcmp.ge.f32.partialorder %v369, 0.0
    %v375 = vmul.f32 %v369, 0.01
    %v376 = vsel %vm374, %v369, %v375
    %v377 = vpack.c.bf16 %v376, %v376
    %v378 = vld [vmem:[#allocation5] sm:$0xff]
    %v379 = vld [vmem:[#allocation5 + $0x8] sm:$0xff]
    %v380 = vld [vmem:[#allocation5 + $0x10] sm:$0xff]
    %v381 = vld [vmem:[#allocation5 + $0x18] sm:$0xff]
    %v382 = vld [vmem:[#allocation5 + $0x20] sm:$0xff]
    %v383 = vld [vmem:[#allocation5 + $0x28] sm:$0xff]
    %v384 = vld [vmem:[#allocation5 + $0x30] sm:$0xff]
    %v385 = vld [vmem:[#allocation5 + $0x38] sm:$0xff]
    %v386 = vld [vmem:[#allocation5 + $0x40] sm:$0xff]
    %v387 = vld [vmem:[#allocation5 + $0x48] sm:$0xff]
    %v388 = vld [vmem:[#allocation5 + $0x50] sm:$0xff]
    %v389 = vld [vmem:[#allocation5 + $0x58] sm:$0xff]
    %v390 = vld [vmem:[#allocation5 + $0x60] sm:$0xff]
    %v391 = vld [vmem:[#allocation5 + $0x68] sm:$0xff]
    %v392 = vld [vmem:[#allocation5 + $0x70] sm:$0xff]
    %v393 = vld [vmem:[#allocation5 + $0x78] sm:$0xff]
    %v394 = vld [vmem:[%s5] sm:$0x3]
    %v396 = vlaneseq
    %v397 = vshrl.u32 %v396, 7
    %v398 = vsub.s32 0, %v397
    %v399 = vrot.slane %v394, %v398
    %v400 = vlaneseq
    %v401 = vshrl.u32 %v400, 7
    %v402 = vsub.s32 1, %v401
    %v403 = vrot.slane %v394, %v402
    %v422 = vunpack.c.l.b16 %v378
    %v423 = vunpack.c.h.b16 %v378
    %v424 = vunpack.c.l.b16 %v379
    %v425 = vunpack.c.h.b16 %v379
    %v426 = vunpack.c.l.b16 %v380
    %v427 = vunpack.c.h.b16 %v380
    %v428 = vunpack.c.l.b16 %v381
    %v429 = vunpack.c.h.b16 %v381
    %v430 = vunpack.c.l.b16 %v382
    %v431 = vunpack.c.h.b16 %v382
    %v432 = vunpack.c.l.b16 %v383
    %v433 = vunpack.c.h.b16 %v383
    %v434 = vunpack.c.l.b16 %v384
    %v435 = vunpack.c.h.b16 %v384
    %v436 = vunpack.c.l.b16 %v385
    %v437 = vunpack.c.h.b16 %v385
    %v438 = vunpack.c.l.b16 %v386
    %v439 = vunpack.c.h.b16 %v386
    %v440 = vunpack.c.l.b16 %v387
    %v441 = vunpack.c.h.b16 %v387
    %v442 = vunpack.c.l.b16 %v388
    %v443 = vunpack.c.h.b16 %v388
    %v444 = vunpack.c.l.b16 %v389
    %v445 = vunpack.c.h.b16 %v389
    %v446 = vunpack.c.l.b16 %v390
    %v447 = vunpack.c.h.b16 %v390
    %v448 = vunpack.c.l.b16 %v391
    %v449 = vunpack.c.h.b16 %v391
    %v450 = vunpack.c.l.b16 %v392
    %v451 = vunpack.c.h.b16 %v392
    %v452 = vunpack.c.l.b16 %v393
    %v453 = vunpack.c.h.b16 %v393
    %v454 = vpack.c.b16 %v424, %v422
    %v455 = vpack.c.b16 %v425, %v423
    %v456 = vpack.c.b16 %v428, %v426
    %v457 = vpack.c.b16 %v429, %v427
    %v458 = vpack.c.b16 %v432, %v430
    %v459 = vpack.c.b16 %v433, %v431
    %v460 = vpack.c.b16 %v436, %v434
    %v461 = vpack.c.b16 %v437, %v435
    %v462 = vpack.c.b16 %v440, %v438
    %v463 = vpack.c.b16 %v441, %v439
    %v464 = vpack.c.b16 %v444, %v442
    %v465 = vpack.c.b16 %v445, %v443
    %v466 = vpack.c.b16 %v448, %v446
    %v467 = vpack.c.b16 %v449, %v447
    %v468 = vpack.c.b16 %v452, %v450
    %v469 = vpack.c.b16 %v453, %v451
    %486 = vmatprep.subr.bf16.mxu0 %v455
    %487 = vmatpush1.bf16.msra.mxu0 %v454
    %488 = vmatprep.subr.bf16.mxu0 %v457
    %489 = vmatpush1.bf16.msra.mxu0 %v456
    %490 = vmatprep.subr.bf16.mxu0 %v459
    %491 = vmatpush1.bf16.msra.mxu0 %v458
    %492 = vmatprep.subr.bf16.mxu0 %v461
    %493 = vmatpush1.bf16.msra.mxu0 %v460
    %494 = vmatprep.subr.bf16.mxu0 %v463
    %495 = vmatpush1.bf16.msra.mxu0 %v462
    %496 = vmatprep.subr.bf16.mxu0 %v465
    %497 = vmatpush1.bf16.msra.mxu0 %v464
    %498 = vmatprep.subr.bf16.mxu0 %v467
    %499 = vmatpush1.bf16.msra.mxu0 %v466
    %500 = vmatprep.subr.bf16.mxu0 %v469
    %501 = vmatpush1.bf16.msra.mxu0 %v468
    %502 = vmatprep.subr.bf16.mxu0 0
    %503 = vmatpush1.bf16.msra.mxu0 0
    %504 = vmatprep.subr.bf16.mxu0 0
    %505 = vmatpush1.bf16.msra.mxu0 0
    %506 = vmatprep.subr.bf16.mxu0 0
    %507 = vmatpush1.bf16.msra.mxu0 0
    %508 = vmatprep.subr.bf16.mxu0 0
    %509 = vmatpush1.bf16.msra.mxu0 0
    %510 = vmatprep.subr.bf16.mxu0 0
    %511 = vmatpush1.bf16.msra.mxu0 0
    %512 = vmatprep.subr.bf16.mxu0 0
    %513 = vmatpush1.bf16.msra.mxu0 0
    %514 = vmatprep.subr.bf16.mxu0 0
    %515 = vmatpush1.bf16.msra.mxu0 0
    %516 = vmatprep.subr.bf16.mxu0 0
    %517 = vmatpush1.bf16.msra.mxu0 0
    %518 = vmatprep.mubr.bf16.mxu0 0
    %519 = vmatmul.mubr.bf16.gmra.mrb[0].mxu0 %v377
    %v520 = vpop.f32.mrb[0].mxu0
    %v521 = vadd.f32 %v399, %v520
    %v522 = vpop.f32.mrb[0].mxu0
    %v523 = vadd.f32 %v403, %v522
    %v524 = vpop.f32.mrb[0].mxu0
    %v525 = vpop.f32.mrb[0].mxu0
    %526 = vdwg.mxu0
    %vm527 = vcmp.ge.f32.partialorder %v521, 0.0
    %v528 = vmul.f32 %v521, 0.01
    %v529 = vsel %vm527, %v521, %v528
    %v530 = vadd.f32 %v529, %v523
    %v531 = vpack.c.bf16 %v530, %v530
    %v532 = vld [vmem:[#allocation7] sm:$0xff]
    %v533 = vld [vmem:[#allocation7 + $0x8] sm:$0xff]
    %v534 = vld [vmem:[#allocation7 + $0x10] sm:$0xff]
    %v535 = vld [vmem:[#allocation7 + $0x18] sm:$0xff]
    %v536 = vld [vmem:[#allocation7 + $0x20] sm:$0xff]
    %v537 = vld [vmem:[#allocation7 + $0x28] sm:$0xff]
    %v538 = vld [vmem:[#allocation7 + $0x30] sm:$0xff]
    %v539 = vld [vmem:[#allocation7 + $0x38] sm:$0xff]
    %v540 = vld [vmem:[#allocation7 + $0x40] sm:$0xff]
    %v541 = vld [vmem:[#allocation7 + $0x48] sm:$0xff]
    %v542 = vld [vmem:[#allocation7 + $0x50] sm:$0xff]
    %v543 = vld [vmem:[#allocation7 + $0x58] sm:$0xff]
    %v544 = vld [vmem:[#allocation7 + $0x60] sm:$0xff]
    %v545 = vld [vmem:[#allocation7 + $0x68] sm:$0xff]
    %v546 = vld [vmem:[#allocation7 + $0x70] sm:$0xff]
    %v547 = vld [vmem:[#allocation7 + $0x78] sm:$0xff]
    %v548 = vld [vmem:[%s7] sm:$0x3]
    %v550 = vlaneseq
    %v551 = vshrl.u32 %v550, 7
    %v552 = vsub.s32 0, %v551
    %v553 = vrot.slane %v548, %v552
    %v554 = vlaneseq
    %v555 = vshrl.u32 %v554, 7
    %v556 = vsub.s32 1, %v555
    %v557 = vrot.slane %v548, %v556
    %v576 = vunpack.c.l.b16 %v532
    %v577 = vunpack.c.h.b16 %v532
    %v578 = vunpack.c.l.b16 %v533
    %v579 = vunpack.c.h.b16 %v533
    %v580 = vunpack.c.l.b16 %v534
    %v581 = vunpack.c.h.b16 %v534
    %v582 = vunpack.c.l.b16 %v535
    %v583 = vunpack.c.h.b16 %v535
    %v584 = vunpack.c.l.b16 %v536
    %v585 = vunpack.c.h.b16 %v536
    %v586 = vunpack.c.l.b16 %v537
    %v587 = vunpack.c.h.b16 %v537
    %v588 = vunpack.c.l.b16 %v538
    %v589 = vunpack.c.h.b16 %v538
    %v590 = vunpack.c.l.b16 %v539
    %v591 = vunpack.c.h.b16 %v539
    %v592 = vunpack.c.l.b16 %v540
    %v593 = vunpack.c.h.b16 %v540
    %v594 = vunpack.c.l.b16 %v541
    %v595 = vunpack.c.h.b16 %v541
    %v596 = vunpack.c.l.b16 %v542
    %v597 = vunpack.c.h.b16 %v542
    %v598 = vunpack.c.l.b16 %v543
    %v599 = vunpack.c.h.b16 %v543
    %v600 = vunpack.c.l.b16 %v544
    %v601 = vunpack.c.h.b16 %v544
    %v602 = vunpack.c.l.b16 %v545
    %v603 = vunpack.c.h.b16 %v545
    %v604 = vunpack.c.l.b16 %v546
    %v605 = vunpack.c.h.b16 %v546
    %v606 = vunpack.c.l.b16 %v547
    %v607 = vunpack.c.h.b16 %v547
    %v608 = vpack.c.b16 %v578, %v576
    %v609 = vpack.c.b16 %v579, %v577
    %v610 = vpack.c.b16 %v582, %v580
    %v611 = vpack.c.b16 %v583, %v581
    %v612 = vpack.c.b16 %v586, %v584
    %v613 = vpack.c.b16 %v587, %v585
    %v614 = vpack.c.b16 %v590, %v588
    %v615 = vpack.c.b16 %v591, %v589
    %v616 = vpack.c.b16 %v594, %v592
    %v617 = vpack.c.b16 %v595, %v593
    %v618 = vpack.c.b16 %v598, %v596
    %v619 = vpack.c.b16 %v599, %v597
    %v620 = vpack.c.b16 %v602, %v600
    %v621 = vpack.c.b16 %v603, %v601
    %v622 = vpack.c.b16 %v606, %v604
    %v623 = vpack.c.b16 %v607, %v605
    %640 = vmatprep.subr.bf16.mxu0 %v609
    %641 = vmatpush1.bf16.msra.mxu0 %v608
    %642 = vmatprep.subr.bf16.mxu0 %v611
    %643 = vmatpush1.bf16.msra.mxu0 %v610
    %644 = vmatprep.subr.bf16.mxu0 %v613
    %645 = vmatpush1.bf16.msra.mxu0 %v612
    %646 = vmatprep.subr.bf16.mxu0 %v615
    %647 = vmatpush1.bf16.msra.mxu0 %v614
    %648 = vmatprep.subr.bf16.mxu0 %v617
    %649 = vmatpush1.bf16.msra.mxu0 %v616
    %650 = vmatprep.subr.bf16.mxu0 %v619
    %651 = vmatpush1.bf16.msra.mxu0 %v618
    %652 = vmatprep.subr.bf16.mxu0 %v621
    %653 = vmatpush1.bf16.msra.mxu0 %v620
    %654 = vmatprep.subr.bf16.mxu0 %v623
    %655 = vmatpush1.bf16.msra.mxu0 %v622
    %656 = vmatprep.subr.bf16.mxu0 0
    %657 = vmatpush1.bf16.msra.mxu0 0
    %658 = vmatprep.subr.bf16.mxu0 0
    %659 = vmatpush1.bf16.msra.mxu0 0
    %660 = vmatprep.subr.bf16.mxu0 0
    %661 = vmatpush1.bf16.msra.mxu0 0
    %662 = vmatprep.subr.bf16.mxu0 0
    %663 = vmatpush1.bf16.msra.mxu0 0
    %664 = vmatprep.subr.bf16.mxu0 0
    %665 = vmatpush1.bf16.msra.mxu0 0
    %666 = vmatprep.subr.bf16.mxu0 0
    %667 = vmatpush1.bf16.msra.mxu0 0
    %668 = vmatprep.subr.bf16.mxu0 0
    %669 = vmatpush1.bf16.msra.mxu0 0
    %670 = vmatprep.subr.bf16.mxu0 0
    %671 = vmatpush1.bf16.msra.mxu0 0
    %672 = vmatprep.mubr.bf16.mxu0 0
    %673 = vmatmul.mubr.bf16.gmra.mrb[0].mxu0 %v531
    %v674 = vpop.f32.mrb[0].mxu0
    %v675 = vadd.f32 %v553, %v674
    %v676 = vpop.f32.mrb[0].mxu0
    %v677 = vadd.f32 %v557, %v676
    %v678 = vpop.f32.mrb[0].mxu0
    %v679 = vpop.f32.mrb[0].mxu0
    %680 = vdwg.mxu0
    %vm681 = vcmp.ge.f32.partialorder %v675, 0.0
    %v682 = vmul.f32 %v675, 0.01
    %v683 = vsel %vm681, %v675, %v682
    %v684 = vadd.f32 %v683, %v677
    %v685 = vpack.c.bf16 %v684, %v684
    %v686 = vld [vmem:[#allocation8] sm:$0xff]
    %v687 = vld [vmem:[#allocation8 + $0x8] sm:$0xff]
    %v688 = vld [vmem:[#allocation8 + $0x10] sm:$0xff]
    %v689 = vld [vmem:[#allocation8 + $0x18] sm:$0xff]
    %v690 = vld [vmem:[#allocation8 + $0x20] sm:$0xff]
    %v691 = vld [vmem:[#allocation8 + $0x28] sm:$0xff]
    %v692 = vld [vmem:[#allocation8 + $0x30] sm:$0xff]
    %v693 = vld [vmem:[#allocation8 + $0x38] sm:$0xff]
    %v694 = vld [vmem:[#allocation8 + $0x40] sm:$0xff]
    %v695 = vld [vmem:[#allocation8 + $0x48] sm:$0xff]
    %v696 = vld [vmem:[#allocation8 + $0x50] sm:$0xff]
    %v697 = vld [vmem:[#allocation8 + $0x58] sm:$0xff]
    %v698 = vld [vmem:[#allocation8 + $0x60] sm:$0xff]
    %v699 = vld [vmem:[#allocation8 + $0x68] sm:$0xff]
    %v700 = vld [vmem:[#allocation8 + $0x70] sm:$0xff]
    %v701 = vld [vmem:[#allocation8 + $0x78] sm:$0xff]
    %v702 = vld [vmem:[%s9] sm:$0x3]
    %v704 = vlaneseq
    %v705 = vshrl.u32 %v704, 7
    %v706 = vsub.s32 0, %v705
    %v707 = vrot.slane %v702, %v706
    %v708 = vlaneseq
    %v709 = vshrl.u32 %v708, 7
    %v710 = vsub.s32 1, %v709
    %v711 = vrot.slane %v702, %v710
    %v730 = vunpack.c.l.b16 %v686
    %v731 = vunpack.c.h.b16 %v686
    %v732 = vunpack.c.l.b16 %v687
    %v733 = vunpack.c.h.b16 %v687
    %v734 = vunpack.c.l.b16 %v688
    %v735 = vunpack.c.h.b16 %v688
    %v736 = vunpack.c.l.b16 %v689
    %v737 = vunpack.c.h.b16 %v689
    %v738 = vunpack.c.l.b16 %v690
    %v739 = vunpack.c.h.b16 %v690
    %v740 = vunpack.c.l.b16 %v691
    %v741 = vunpack.c.h.b16 %v691
    %v742 = vunpack.c.l.b16 %v692
    %v743 = vunpack.c.h.b16 %v692
    %v744 = vunpack.c.l.b16 %v693
    %v745 = vunpack.c.h.b16 %v693
    %v746 = vunpack.c.l.b16 %v694
    %v747 = vunpack.c.h.b16 %v694
    %v748 = vunpack.c.l.b16 %v695
    %v749 = vunpack.c.h.b16 %v695
    %v750 = vunpack.c.l.b16 %v696
    %v751 = vunpack.c.h.b16 %v696
    %v752 = vunpack.c.l.b16 %v697
    %v753 = vunpack.c.h.b16 %v697
    %v754 = vunpack.c.l.b16 %v698
    %v755 = vunpack.c.h.b16 %v698
    %v756 = vunpack.c.l.b16 %v699
    %v757 = vunpack.c.h.b16 %v699
    %v758 = vunpack.c.l.b16 %v700
    %v759 = vunpack.c.h.b16 %v700
    %v760 = vunpack.c.l.b16 %v701
    %v761 = vunpack.c.h.b16 %v701
    %v762 = vpack.c.b16 %v732, %v730
    %v763 = vpack.c.b16 %v733, %v731
    %v764 = vpack.c.b16 %v736, %v734
    %v765 = vpack.c.b16 %v737, %v735
    %v766 = vpack.c.b16 %v740, %v738
    %v767 = vpack.c.b16 %v741, %v739
    %v768 = vpack.c.b16 %v744, %v742
    %v769 = vpack.c.b16 %v745, %v743
    %v770 = vpack.c.b16 %v748, %v746
    %v771 = vpack.c.b16 %v749, %v747
    %v772 = vpack.c.b16 %v752, %v750
    %v773 = vpack.c.b16 %v753, %v751
    %v774 = vpack.c.b16 %v756, %v754
    %v775 = vpack.c.b16 %v757, %v755
    %v776 = vpack.c.b16 %v760, %v758
    %v777 = vpack.c.b16 %v761, %v759
    %794 = vmatprep.subr.bf16.mxu0 %v763
    %795 = vmatpush1.bf16.msra.mxu0 %v762
    %796 = vmatprep.subr.bf16.mxu0 %v765
    %797 = vmatpush1.bf16.msra.mxu0 %v764
    %798 = vmatprep.subr.bf16.mxu0 %v767
    %799 = vmatpush1.bf16.msra.mxu0 %v766
    %800 = vmatprep.subr.bf16.mxu0 %v769
    %801 = vmatpush1.bf16.msra.mxu0 %v768
    %802 = vmatprep.subr.bf16.mxu0 %v771
    %803 = vmatpush1.bf16.msra.mxu0 %v770
    %804 = vmatprep.subr.bf16.mxu0 %v773
    %805 = vmatpush1.bf16.msra.mxu0 %v772
    %806 = vmatprep.subr.bf16.mxu0 %v775
    %807 = vmatpush1.bf16.msra.mxu0 %v774
    %808 = vmatprep.subr.bf16.mxu0 %v777
    %809 = vmatpush1.bf16.msra.mxu0 %v776
    %810 = vmatprep.subr.bf16.mxu0 0
    %811 = vmatpush1.bf16.msra.mxu0 0
    %812 = vmatprep.subr.bf16.mxu0 0
    %813 = vmatpush1.bf16.msra.mxu0 0
    %814 = vmatprep.subr.bf16.mxu0 0
    %815 = vmatpush1.bf16.msra.mxu0 0
    %816 = vmatprep.subr.bf16.mxu0 0
    %817 = vmatpush1.bf16.msra.mxu0 0
    %818 = vmatprep.subr.bf16.mxu0 0
    %819 = vmatpush1.bf16.msra.mxu0 0
    %820 = vmatprep.subr.bf16.mxu0 0
    %821 = vmatpush1.bf16.msra.mxu0 0
    %822 = vmatprep.subr.bf16.mxu0 0
    %823 = vmatpush1.bf16.msra.mxu0 0
    %824 = vmatprep.subr.bf16.mxu0 0
    %825 = vmatpush1.bf16.msra.mxu0 0
    %826 = vmatprep.mubr.bf16.mxu0 0
    %827 = vmatmul.mubr.bf16.gmra.mrb[0].mxu0 %v685
    %v828 = vpop.f32.mrb[0].mxu0
    %v829 = vadd.f32 %v707, %v828
    %v830 = vpop.f32.mrb[0].mxu0
    %v831 = vadd.f32 %v711, %v830
    %v832 = vpop.f32.mrb[0].mxu0
    %v833 = vpop.f32.mrb[0].mxu0
    %834 = vdwg.mxu0
    %v835 = vld [vmem:[%s1] sm:$0xff]
    %v836 = vmul.f32 %v831, 0.5
    %v837 = vmul.f32 %v836, 1.442695
    %v838 = vpow.pop %v837
    %v839 = vmul.f32 %v835, %v838
    %v840 = vadd.f32 %v829, %v839
    %v841 = vpack.c.bf16 %v840, %v840
    %v842 = vld [vmem:[#allocation10] sm:$0xff]
    %v843 = vld [vmem:[#allocation10 + $0x8] sm:$0xff]
    %v844 = vld [vmem:[#allocation10 + $0x10] sm:$0xff]
    %v845 = vld [vmem:[#allocation10 + $0x18] sm:$0xff]
    %v846 = vld [vmem:[#allocation10 + $0x20] sm:$0xff]
    %v847 = vld [vmem:[#allocation10 + $0x28] sm:$0xff]
    %v848 = vld [vmem:[#allocation10 + $0x30] sm:$0xff]
    %v849 = vld [vmem:[#allocation10 + $0x38] sm:$0xff]
    %v850 = vld [vmem:[#allocation10 + $0x40] sm:$0xff]
    %v851 = vld [vmem:[#allocation10 + $0x48] sm:$0xff]
    %v852 = vld [vmem:[#allocation10 + $0x50] sm:$0xff]
    %v853 = vld [vmem:[#allocation10 + $0x58] sm:$0xff]
    %v854 = vld [vmem:[#allocation10 + $0x60] sm:$0xff]
    %v855 = vld [vmem:[#allocation10 + $0x68] sm:$0xff]
    %v856 = vld [vmem:[#allocation10 + $0x70] sm:$0xff]
    %v857 = vld [vmem:[#allocation10 + $0x78] sm:$0xff]
    %v858 = vld [vmem:[%s11] sm:$0x3]
    %v860 = vlaneseq
    %v861 = vshrl.u32 %v860, 7
    %v862 = vsub.s32 0, %v861
    %v863 = vrot.slane %v858, %v862
    %v864 = vlaneseq
    %v865 = vshrl.u32 %v864, 7
    %v866 = vsub.s32 1, %v865
    %v867 = vrot.slane %v858, %v866
    %v886 = vunpack.c.l.b16 %v842
    %v887 = vunpack.c.h.b16 %v842
    %v888 = vunpack.c.l.b16 %v843
    %v889 = vunpack.c.h.b16 %v843
    %v890 = vunpack.c.l.b16 %v844
    %v891 = vunpack.c.h.b16 %v844
    %v892 = vunpack.c.l.b16 %v845
    %v893 = vunpack.c.h.b16 %v845
    %v894 = vunpack.c.l.b16 %v846
    %v895 = vunpack.c.h.b16 %v846
    %v896 = vunpack.c.l.b16 %v847
    %v897 = vunpack.c.h.b16 %v847
    %v898 = vunpack.c.l.b16 %v848
    %v899 = vunpack.c.h.b16 %v848
    %v900 = vunpack.c.l.b16 %v849
    %v901 = vunpack.c.h.b16 %v849
    %v902 = vunpack.c.l.b16 %v850
    %v903 = vunpack.c.h.b16 %v850
    %v904 = vunpack.c.l.b16 %v851
    %v905 = vunpack.c.h.b16 %v851
    %v906 = vunpack.c.l.b16 %v852
    %v907 = vunpack.c.h.b16 %v852
    %v908 = vunpack.c.l.b16 %v853
    %v909 = vunpack.c.h.b16 %v853
    %v910 = vunpack.c.l.b16 %v854
    %v911 = vunpack.c.h.b16 %v854
    %v912 = vunpack.c.l.b16 %v855
    %v913 = vunpack.c.h.b16 %v855
    %v914 = vunpack.c.l.b16 %v856
    %v915 = vunpack.c.h.b16 %v856
    %v916 = vunpack.c.l.b16 %v857
    %v917 = vunpack.c.h.b16 %v857
    %v918 = vpack.c.b16 %v888, %v886
    %v919 = vpack.c.b16 %v889, %v887
    %v920 = vpack.c.b16 %v892, %v890
    %v921 = vpack.c.b16 %v893, %v891
    %v922 = vpack.c.b16 %v896, %v894
    %v923 = vpack.c.b16 %v897, %v895
    %v924 = vpack.c.b16 %v900, %v898
    %v925 = vpack.c.b16 %v901, %v899
    %v926 = vpack.c.b16 %v904, %v902
    %v927 = vpack.c.b16 %v905, %v903
    %v928 = vpack.c.b16 %v908, %v906
    %v929 = vpack.c.b16 %v909, %v907
    %v930 = vpack.c.b16 %v912, %v910
    %v931 = vpack.c.b16 %v913, %v911
    %v932 = vpack.c.b16 %v916, %v914
    %v933 = vpack.c.b16 %v917, %v915
    %950 = vmatprep.subr.bf16.mxu0 %v919
    %951 = vmatpush1.bf16.msra.mxu0 %v918
    %952 = vmatprep.subr.bf16.mxu0 %v921
    %953 = vmatpush1.bf16.msra.mxu0 %v920
    %954 = vmatprep.subr.bf16.mxu0 %v923
    %955 = vmatpush1.bf16.msra.mxu0 %v922
    %956 = vmatprep.subr.bf16.mxu0 %v925
    %957 = vmatpush1.bf16.msra.mxu0 %v924
    %958 = vmatprep.subr.bf16.mxu0 %v927
    %959 = vmatpush1.bf16.msra.mxu0 %v926
    %960 = vmatprep.subr.bf16.mxu0 %v929
    %961 = vmatpush1.bf16.msra.mxu0 %v928
    %962 = vmatprep.subr.bf16.mxu0 %v931
    %963 = vmatpush1.bf16.msra.mxu0 %v930
    %964 = vmatprep.subr.bf16.mxu0 %v933
    %965 = vmatpush1.bf16.msra.mxu0 %v932
    %966 = vmatprep.subr.bf16.mxu0 0
    %967 = vmatpush1.bf16.msra.mxu0 0
    %968 = vmatprep.subr.bf16.mxu0 0
    %969 = vmatpush1.bf16.msra.mxu0 0
    %970 = vmatprep.subr.bf16.mxu0 0
    %971 = vmatpush1.bf16.msra.mxu0 0
    %972 = vmatprep.subr.bf16.mxu0 0
    %973 = vmatpush1.bf16.msra.mxu0 0
    %974 = vmatprep.subr.bf16.mxu0 0
    %975 = vmatpush1.bf16.msra.mxu0 0
    %976 = vmatprep.subr.bf16.mxu0 0
    %977 = vmatpush1.bf16.msra.mxu0 0
    %978 = vmatprep.subr.bf16.mxu0 0
    %979 = vmatpush1.bf16.msra.mxu0 0
    %980 = vmatprep.subr.bf16.mxu0 0
    %981 = vmatpush1.bf16.msra.mxu0 0
    %982 = vmatprep.mubr.bf16.mxu0 0
    %983 = vmatmul.mubr.bf16.gmra.mrb[0].mxu0 %v841
    %v984 = vpop.f32.mrb[0].mxu0
    %v985 = vadd.f32 %v863, %v984
    %v986 = vpop.f32.mrb[0].mxu0
    %v987 = vadd.f32 %v867, %v986
    %v988 = vpop.f32.mrb[0].mxu0
    %v989 = vpop.f32.mrb[0].mxu0
    %990 = vdwg.mxu0
    %vm991 = vcmp.ge.f32.partialorder %v985, 0.0
    %v992 = vmul.f32 %v985, 0.01
    %v993 = vsel %vm991, %v985, %v992
    %v994 = vpack.c.bf16 %v993, %v993
    %v995 = vld [vmem:[#allocation11] sm:$0xff]
    %v996 = vld [vmem:[#allocation11 + $0x8] sm:$0xff]
    %v997 = vld [vmem:[#allocation11 + $0x10] sm:$0xff]
    %v998 = vld [vmem:[#allocation11 + $0x18] sm:$0xff]
    %v999 = vld [vmem:[#allocation11 + $0x20] sm:$0xff]
    %v1000 = vld [vmem:[#allocation11 + $0x28] sm:$0xff]
    %v1001 = vld [vmem:[#allocation11 + $0x30] sm:$0xff]
    %v1002 = vld [vmem:[#allocation11 + $0x38] sm:$0xff]
    %v1003 = vld [vmem:[#allocation11 + $0x40] sm:$0xff]
    %v1004 = vld [vmem:[#allocation11 + $0x48] sm:$0xff]
    %v1005 = vld [vmem:[#allocation11 + $0x50] sm:$0xff]
    %v1006 = vld [vmem:[#allocation11 + $0x58] sm:$0xff]
    %v1007 = vld [vmem:[#allocation11 + $0x60] sm:$0xff]
    %v1008 = vld [vmem:[#allocation11 + $0x68] sm:$0xff]
    %v1009 = vld [vmem:[#allocation11 + $0x70] sm:$0xff]
    %v1010 = vld [vmem:[#allocation11 + $0x78] sm:$0xff]
    %v1011 = vld [vmem:[%s13] sm:$0x3]
    %v1013 = vlaneseq
    %v1014 = vshrl.u32 %v1013, 7
    %v1015 = vsub.s32 0, %v1014
    %v1016 = vrot.slane %v1011, %v1015
    %v1017 = vlaneseq
    %v1018 = vshrl.u32 %v1017, 7
    %v1019 = vsub.s32 1, %v1018
    %v1020 = vrot.slane %v1011, %v1019
    %v1039 = vunpack.c.l.b16 %v995
    %v1040 = vunpack.c.h.b16 %v995
    %v1041 = vunpack.c.l.b16 %v996
    %v1042 = vunpack.c.h.b16 %v996
    %v1043 = vunpack.c.l.b16 %v997
    %v1044 = vunpack.c.h.b16 %v997
    %v1045 = vunpack.c.l.b16 %v998
    %v1046 = vunpack.c.h.b16 %v998
    %v1047 = vunpack.c.l.b16 %v999
    %v1048 = vunpack.c.h.b16 %v999
    %v1049 = vunpack.c.l.b16 %v1000
    %v1050 = vunpack.c.h.b16 %v1000
    %v1051 = vunpack.c.l.b16 %v1001
    %v1052 = vunpack.c.h.b16 %v1001
    %v1053 = vunpack.c.l.b16 %v1002
    %v1054 = vunpack.c.h.b16 %v1002
    %v1055 = vunpack.c.l.b16 %v1003
    %v1056 = vunpack.c.h.b16 %v1003
    %v1057 = vunpack.c.l.b16 %v1004
    %v1058 = vunpack.c.h.b16 %v1004
    %v1059 = vunpack.c.l.b16 %v1005
    %v1060 = vunpack.c.h.b16 %v1005
    %v1061 = vunpack.c.l.b16 %v1006
    %v1062 = vunpack.c.h.b16 %v1006
    %v1063 = vunpack.c.l.b16 %v1007
    %v1064 = vunpack.c.h.b16 %v1007
    %v1065 = vunpack.c.l.b16 %v1008
    %v1066 = vunpack.c.h.b16 %v1008
    %v1067 = vunpack.c.l.b16 %v1009
    %v1068 = vunpack.c.h.b16 %v1009
    %v1069 = vunpack.c.l.b16 %v1010
    %v1070 = vunpack.c.h.b16 %v1010
    %v1071 = vpack.c.b16 %v1041, %v1039
    %v1072 = vpack.c.b16 %v1042, %v1040
    %v1073 = vpack.c.b16 %v1045, %v1043
    %v1074 = vpack.c.b16 %v1046, %v1044
    %v1075 = vpack.c.b16 %v1049, %v1047
    %v1076 = vpack.c.b16 %v1050, %v1048
    %v1077 = vpack.c.b16 %v1053, %v1051
    %v1078 = vpack.c.b16 %v1054, %v1052
    %v1079 = vpack.c.b16 %v1057, %v1055
    %v1080 = vpack.c.b16 %v1058, %v1056
    %v1081 = vpack.c.b16 %v1061, %v1059
    %v1082 = vpack.c.b16 %v1062, %v1060
    %v1083 = vpack.c.b16 %v1065, %v1063
    %v1084 = vpack.c.b16 %v1066, %v1064
    %v1085 = vpack.c.b16 %v1069, %v1067
    %v1086 = vpack.c.b16 %v1070, %v1068
    %1103 = vmatprep.subr.bf16.mxu0 %v1072
    %1104 = vmatpush1.bf16.msra.mxu0 %v1071
    %1105 = vmatprep.subr.bf16.mxu0 %v1074
    %1106 = vmatpush1.bf16.msra.mxu0 %v1073
    %1107 = vmatprep.subr.bf16.mxu0 %v1076
    %1108 = vmatpush1.bf16.msra.mxu0 %v1075
    %1109 = vmatprep.subr.bf16.mxu0 %v1078
    %1110 = vmatpush1.bf16.msra.mxu0 %v1077
    %1111 = vmatprep.subr.bf16.mxu0 %v1080
    %1112 = vmatpush1.bf16.msra.mxu0 %v1079
    %1113 = vmatprep.subr.bf16.mxu0 %v1082
    %1114 = vmatpush1.bf16.msra.mxu0 %v1081
    %1115 = vmatprep.subr.bf16.mxu0 %v1084
    %1116 = vmatpush1.bf16.msra.mxu0 %v1083
    %1117 = vmatprep.subr.bf16.mxu0 %v1086
    %1118 = vmatpush1.bf16.msra.mxu0 %v1085
    %1119 = vmatprep.subr.bf16.mxu0 0
    %1120 = vmatpush1.bf16.msra.mxu0 0
    %1121 = vmatprep.subr.bf16.mxu0 0
    %1122 = vmatpush1.bf16.msra.mxu0 0
    %1123 = vmatprep.subr.bf16.mxu0 0
    %1124 = vmatpush1.bf16.msra.mxu0 0
    %1125 = vmatprep.subr.bf16.mxu0 0
    %1126 = vmatpush1.bf16.msra.mxu0 0
    %1127 = vmatprep.subr.bf16.mxu0 0
    %1128 = vmatpush1.bf16.msra.mxu0 0
    %1129 = vmatprep.subr.bf16.mxu0 0
    %1130 = vmatpush1.bf16.msra.mxu0 0
    %1131 = vmatprep.subr.bf16.mxu0 0
    %1132 = vmatpush1.bf16.msra.mxu0 0
    %1133 = vmatprep.subr.bf16.mxu0 0
    %1134 = vmatpush1.bf16.msra.mxu0 0
    %1135 = vmatprep.mubr.bf16.mxu0 0
    %1136 = vmatmul.mubr.bf16.gmra.mrb[0].mxu0 %v994
    %v1137 = vpop.f32.mrb[0].mxu0
    %v1138 = vadd.f32 %v1016, %v1137
    %v1139 = vpop.f32.mrb[0].mxu0
    %v1140 = vadd.f32 %v1020, %v1139
    %v1141 = vpop.f32.mrb[0].mxu0
    %v1142 = vpop.f32.mrb[0].mxu0
    %1143 = vdwg.mxu0
    %vm1144 = vcmp.ge.f32.partialorder %v1138, 0.0
    %v1145 = vmul.f32 %v1138, 0.01
    %v1146 = vsel %vm1144, %v1138, %v1145
    %v1147 = vadd.f32 %v1146, %v1140
    %v1148 = vpack.c.bf16 %v1147, %v1147
    %v1149 = vld [vmem:[#allocation13] sm:$0xff]
    %v1150 = vld [vmem:[#allocation13 + $0x8] sm:$0xff]
    %v1151 = vld [vmem:[#allocation13 + $0x10] sm:$0xff]
    %v1152 = vld [vmem:[#allocation13 + $0x18] sm:$0xff]
    %v1153 = vld [vmem:[#allocation13 + $0x20] sm:$0xff]
    %v1154 = vld [vmem:[#allocation13 + $0x28] sm:$0xff]
    %v1155 = vld [vmem:[#allocation13 + $0x30] sm:$0xff]
    %v1156 = vld [vmem:[#allocation13 + $0x38] sm:$0xff]
    %v1157 = vld [vmem:[#allocation13 + $0x40] sm:$0xff]
    %v1158 = vld [vmem:[#allocation13 + $0x48] sm:$0xff]
    %v1159 = vld [vmem:[#allocation13 + $0x50] sm:$0xff]
    %v1160 = vld [vmem:[#allocation13 + $0x58] sm:$0xff]
    %v1161 = vld [vmem:[#allocation13 + $0x60] sm:$0xff]
    %v1162 = vld [vmem:[#allocation13 + $0x68] sm:$0xff]
    %v1163 = vld [vmem:[#allocation13 + $0x70] sm:$0xff]
    %v1164 = vld [vmem:[#allocation13 + $0x78] sm:$0xff]
    %v1165 = vld [vmem:[#allocation14] sm:$0x3]
    %v1167 = vlaneseq
    %v1168 = vshrl.u32 %v1167, 7
    %v1169 = vsub.s32 0, %v1168
    %v1170 = vrot.slane %v1165, %v1169
    %v1171 = vlaneseq
    %v1172 = vshrl.u32 %v1171, 7
    %v1173 = vsub.s32 1, %v1172
    %v1174 = vrot.slane %v1165, %v1173
    %v1193 = vunpack.c.l.b16 %v1149
    %v1194 = vunpack.c.h.b16 %v1149
    %v1195 = vunpack.c.l.b16 %v1150
    %v1196 = vunpack.c.h.b16 %v1150
    %v1197 = vunpack.c.l.b16 %v1151
    %v1198 = vunpack.c.h.b16 %v1151
    %v1199 = vunpack.c.l.b16 %v1152
    %v1200 = vunpack.c.h.b16 %v1152
    %v1201 = vunpack.c.l.b16 %v1153
    %v1202 = vunpack.c.h.b16 %v1153
    %v1203 = vunpack.c.l.b16 %v1154
    %v1204 = vunpack.c.h.b16 %v1154
    %v1205 = vunpack.c.l.b16 %v1155
    %v1206 = vunpack.c.h.b16 %v1155
    %v1207 = vunpack.c.l.b16 %v1156
    %v1208 = vunpack.c.h.b16 %v1156
    %v1209 = vunpack.c.l.b16 %v1157
    %v1210 = vunpack.c.h.b16 %v1157
    %v1211 = vunpack.c.l.b16 %v1158
    %v1212 = vunpack.c.h.b16 %v1158
    %v1213 = vunpack.c.l.b16 %v1159
    %v1214 = vunpack.c.h.b16 %v1159
    %v1215 = vunpack.c.l.b16 %v1160
    %v1216 = vunpack.c.h.b16 %v1160
    %v1217 = vunpack.c.l.b16 %v1161
    %v1218 = vunpack.c.h.b16 %v1161
    %v1219 = vunpack.c.l.b16 %v1162
    %v1220 = vunpack.c.h.b16 %v1162
    %v1221 = vunpack.c.l.b16 %v1163
    %v1222 = vunpack.c.h.b16 %v1163
    %v1223 = vunpack.c.l.b16 %v1164
    %v1224 = vunpack.c.h.b16 %v1164
    %v1225 = vpack.c.b16 %v1195, %v1193
    %v1226 = vpack.c.b16 %v1196, %v1194
    %v1227 = vpack.c.b16 %v1199, %v1197
    %v1228 = vpack.c.b16 %v1200, %v1198
    %v1229 = vpack.c.b16 %v1203, %v1201
    %v1230 = vpack.c.b16 %v1204, %v1202
    %v1231 = vpack.c.b16 %v1207, %v1205
    %v1232 = vpack.c.b16 %v1208, %v1206
    %v1233 = vpack.c.b16 %v1211, %v1209
    %v1234 = vpack.c.b16 %v1212, %v1210
    %v1235 = vpack.c.b16 %v1215, %v1213
    %v1236 = vpack.c.b16 %v1216, %v1214
    %v1237 = vpack.c.b16 %v1219, %v1217
    %v1238 = vpack.c.b16 %v1220, %v1218
    %v1239 = vpack.c.b16 %v1223, %v1221
    %v1240 = vpack.c.b16 %v1224, %v1222
    %1257 = vmatprep.subr.bf16.mxu0 %v1226
    %1258 = vmatpush1.bf16.msra.mxu0 %v1225
    %1259 = vmatprep.subr.bf16.mxu0 %v1228
    %1260 = vmatpush1.bf16.msra.mxu0 %v1227
    %1261 = vmatprep.subr.bf16.mxu0 %v1230
    %1262 = vmatpush1.bf16.msra.mxu0 %v1229
    %1263 = vmatprep.subr.bf16.mxu0 %v1232
    %1264 = vmatpush1.bf16.msra.mxu0 %v1231
    %1265 = vmatprep.subr.bf16.mxu0 %v1234
    %1266 = vmatpush1.bf16.msra.mxu0 %v1233
    %1267 = vmatprep.subr.bf16.mxu0 %v1236
    %1268 = vmatpush1.bf16.msra.mxu0 %v1235
    %1269 = vmatprep.subr.bf16.mxu0 %v1238
    %1270 = vmatpush1.bf16.msra.mxu0 %v1237
    %1271 = vmatprep.subr.bf16.mxu0 %v1240
    %1272 = vmatpush1.bf16.msra.mxu0 %v1239
    %1273 = vmatprep.subr.bf16.mxu0 0
    %1274 = vmatpush1.bf16.msra.mxu0 0
    %1275 = vmatprep.subr.bf16.mxu0 0
    %1276 = vmatpush1.bf16.msra.mxu0 0
    %1277 = vmatprep.subr.bf16.mxu0 0
    %1278 = vmatpush1.bf16.msra.mxu0 0
    %1279 = vmatprep.subr.bf16.mxu0 0
    %1280 = vmatpush1.bf16.msra.mxu0 0
    %1281 = vmatprep.subr.bf16.mxu0 0
    %1282 = vmatpush1.bf16.msra.mxu0 0
    %1283 = vmatprep.subr.bf16.mxu0 0
    %1284 = vmatpush1.bf16.msra.mxu0 0
    %1285 = vmatprep.subr.bf16.mxu0 0
    %1286 = vmatpush1.bf16.msra.mxu0 0
    %1287 = vmatprep.subr.bf16.mxu0 0
    %1288 = vmatpush1.bf16.msra.mxu0 0
    %1289 = vmatprep.mubr.bf16.mxu0 0
    %1290 = vmatmul.mubr.bf16.gmra.mrb[0].mxu0 %v1148
    %v1291 = vpop.f32.mrb[0].mxu0
    %v1292 = vadd.f32 %v1170, %v1291
    %v1293 = vpop.f32.mrb[0].mxu0
    %v1294 = vadd.f32 %v1174, %v1293
    %v1295 = vpop.f32.mrb[0].mxu0
    %v1296 = vpop.f32.mrb[0].mxu0
    %1297 = vdwg.mxu0
    %vm1298 = vcmp.ge.f32.partialorder %v1292, 0.0
    %v1299 = vmul.f32 %v1292, 0.01
    %v1300 = vsel %vm1298, %v1292, %v1299
    %v1301 = vadd.f32 %v1300, %v1294
    %v1302 = vpack.c.bf16 %v1301, %v1301
    %v1303 = vld [vmem:[#allocation16] sm:$0xff]
    %v1304 = vld [vmem:[#allocation16 + $0x8] sm:$0xff]
    %v1305 = vld [vmem:[#allocation16 + $0x10] sm:$0xff]
    %v1306 = vld [vmem:[#allocation16 + $0x18] sm:$0xff]
    %v1307 = vld [vmem:[#allocation16 + $0x20] sm:$0xff]
    %v1308 = vld [vmem:[#allocation16 + $0x28] sm:$0xff]
    %v1309 = vld [vmem:[#allocation16 + $0x30] sm:$0xff]
    %v1310 = vld [vmem:[#allocation16 + $0x38] sm:$0xff]
    %v1311 = vld [vmem:[#allocation16 + $0x40] sm:$0xff]
    %v1312 = vld [vmem:[#allocation16 + $0x48] sm:$0xff]
    %v1313 = vld [vmem:[#allocation16 + $0x50] sm:$0xff]
    %v1314 = vld [vmem:[#allocation16 + $0x58] sm:$0xff]
    %v1315 = vld [vmem:[#allocation16 + $0x60] sm:$0xff]
    %v1316 = vld [vmem:[#allocation16 + $0x68] sm:$0xff]
    %v1317 = vld [vmem:[#allocation16 + $0x70] sm:$0xff]
    %v1318 = vld [vmem:[#allocation16 + $0x78] sm:$0xff]
    %v1319 = vld [vmem:[#allocation17] sm:$0x3]
    %v1321 = vlaneseq
    %v1322 = vshrl.u32 %v1321, 7
    %v1323 = vsub.s32 0, %v1322
    %v1324 = vrot.slane %v1319, %v1323
    %v1325 = vlaneseq
    %v1326 = vshrl.u32 %v1325, 7
    %v1327 = vsub.s32 1, %v1326
    %v1328 = vrot.slane %v1319, %v1327
    %v1347 = vunpack.c.l.b16 %v1303
    %v1348 = vunpack.c.h.b16 %v1303
    %v1349 = vunpack.c.l.b16 %v1304
    %v1350 = vunpack.c.h.b16 %v1304
    %v1351 = vunpack.c.l.b16 %v1305
    %v1352 = vunpack.c.h.b16 %v1305
    %v1353 = vunpack.c.l.b16 %v1306
    %v1354 = vunpack.c.h.b16 %v1306
    %v1355 = vunpack.c.l.b16 %v1307
    %v1356 = vunpack.c.h.b16 %v1307
    %v1357 = vunpack.c.l.b16 %v1308
    %v1358 = vunpack.c.h.b16 %v1308
    %v1359 = vunpack.c.l.b16 %v1309
    %v1360 = vunpack.c.h.b16 %v1309
    %v1361 = vunpack.c.l.b16 %v1310
    %v1362 = vunpack.c.h.b16 %v1310
    %v1363 = vunpack.c.l.b16 %v1311
    %v1364 = vunpack.c.h.b16 %v1311
    %v1365 = vunpack.c.l.b16 %v1312
    %v1366 = vunpack.c.h.b16 %v1312
    %v1367 = vunpack.c.l.b16 %v1313
    %v1368 = vunpack.c.h.b16 %v1313
    %v1369 = vunpack.c.l.b16 %v1314
    %v1370 = vunpack.c.h.b16 %v1314
    %v1371 = vunpack.c.l.b16 %v1315
    %v1372 = vunpack.c.h.b16 %v1315
    %v1373 = vunpack.c.l.b16 %v1316
    %v1374 = vunpack.c.h.b16 %v1316
    %v1375 = vunpack.c.l.b16 %v1317
    %v1376 = vunpack.c.h.b16 %v1317
    %v1377 = vunpack.c.l.b16 %v1318
    %v1378 = vunpack.c.h.b16 %v1318
    %v1379 = vpack.c.b16 %v1349, %v1347
    %v1380 = vpack.c.b16 %v1350, %v1348
    %v1381 = vpack.c.b16 %v1353, %v1351
    %v1382 = vpack.c.b16 %v1354, %v1352
    %v1383 = vpack.c.b16 %v1357, %v1355
    %v1384 = vpack.c.b16 %v1358, %v1356
    %v1385 = vpack.c.b16 %v1361, %v1359
    %v1386 = vpack.c.b16 %v1362, %v1360
    %v1387 = vpack.c.b16 %v1365, %v1363
    %v1388 = vpack.c.b16 %v1366, %v1364
    %v1389 = vpack.c.b16 %v1369, %v1367
    %v1390 = vpack.c.b16 %v1370, %v1368
    %v1391 = vpack.c.b16 %v1373, %v1371
    %v1392 = vpack.c.b16 %v1374, %v1372
    %v1393 = vpack.c.b16 %v1377, %v1375
    %v1394 = vpack.c.b16 %v1378, %v1376
    %1411 = vmatprep.subr.bf16.mxu0 %v1380
    %1412 = vmatpush1.bf16.msra.mxu0 %v1379
    %1413 = vmatprep.subr.bf16.mxu0 %v1382
    %1414 = vmatpush1.bf16.msra.mxu0 %v1381
    %1415 = vmatprep.subr.bf16.mxu0 %v1384
    %1416 = vmatpush1.bf16.msra.mxu0 %v1383
    %1417 = vmatprep.subr.bf16.mxu0 %v1386
    %1418 = vmatpush1.bf16.msra.mxu0 %v1385
    %1419 = vmatprep.subr.bf16.mxu0 %v1388
    %1420 = vmatpush1.bf16.msra.mxu0 %v1387
    %1421 = vmatprep.subr.bf16.mxu0 %v1390
    %1422 = vmatpush1.bf16.msra.mxu0 %v1389
    %1423 = vmatprep.subr.bf16.mxu0 %v1392
    %1424 = vmatpush1.bf16.msra.mxu0 %v1391
    %1425 = vmatprep.subr.bf16.mxu0 %v1394
    %1426 = vmatpush1.bf16.msra.mxu0 %v1393
    %1427 = vmatprep.subr.bf16.mxu0 0
    %1428 = vmatpush1.bf16.msra.mxu0 0
    %1429 = vmatprep.subr.bf16.mxu0 0
    %1430 = vmatpush1.bf16.msra.mxu0 0
    %1431 = vmatprep.subr.bf16.mxu0 0
    %1432 = vmatpush1.bf16.msra.mxu0 0
    %1433 = vmatprep.subr.bf16.mxu0 0
    %1434 = vmatpush1.bf16.msra.mxu0 0
    %1435 = vmatprep.subr.bf16.mxu0 0
    %1436 = vmatpush1.bf16.msra.mxu0 0
    %1437 = vmatprep.subr.bf16.mxu0 0
    %1438 = vmatpush1.bf16.msra.mxu0 0
    %1439 = vmatprep.subr.bf16.mxu0 0
    %1440 = vmatpush1.bf16.msra.mxu0 0
    %1441 = vmatprep.subr.bf16.mxu0 0
    %1442 = vmatpush1.bf16.msra.mxu0 0
    %1443 = vmatprep.mubr.bf16.mxu0 0
    %1444 = vmatmul.mubr.bf16.gmra.mrb[0].mxu0 %v1302
    %v1445 = vpop.f32.mrb[0].mxu0
    %v1446 = vadd.f32 %v1324, %v1445
    %v1447 = vpop.f32.mrb[0].mxu0
    %v1448 = vadd.f32 %v1328, %v1447
    %v1449 = vpop.f32.mrb[0].mxu0
    %v1450 = vpop.f32.mrb[0].mxu0
    %1451 = vdwg.mxu0
    %1452 = vst [vmem:[#allocation19] sm:$0xff] %v1446
    %1453 = vst [vmem:[#allocation19 + $0x8] sm:$0xff] %v1448
    %1454 = vst [vmem:[%s19] sm:$0xff] %v829
    %1455 = vst [vmem:[%s19 + $0x8] sm:$0xff] %v831
    %1456 = vst [vmem:[%s19 + $0x10] sm:$0xff] %v840
    %1457 = vst [vmem:[%s19 + $0x18] sm:$0xff] %v987
    // Predicated region
    $region114: #{cvae_dnn_liner_forward.1} parent=1 // pred_check
      _
    $region115: #{cvae_dnn_liner_forward.1} parent=1 // pred_check_branch
      %1459 = sbr.rel (0) target = $region117
    $region116: #{cvae_dnn_liner_forward.1} parent=1 // pred_region
      %s1461 = ssub.s32 256, 256
      %1462 = vsyncadd [#allocation4], %s1461
      %s1464 = sshll.u32 [#allocation19], 4
      %s1465 = int_to_ptr.vmem [resolvable:$true] %s1464
      %1467 = dma.vmem_to_hbm [thread:$0]  %s1465, 256, %s18, [#allocation4]
    $region117: #{cvae_dnn_liner_forward.1} parent=1 // pred_fallthru
      _
    // Predicated region
    $region118: #{cvae_dnn_liner_forward.1} parent=1 // pred_check
      _
    $region119: #{cvae_dnn_liner_forward.1} parent=1 // pred_check_branch
      %1469 = sbr.rel (0) target = $region121
    $region120: #{cvae_dnn_liner_forward.1} parent=1 // pred_region
      _
    $region121: #{cvae_dnn_liner_forward.1} parent=1 // pred_fallthru
      _
    // Predicated region
    $region122: #{cvae_dnn_liner_forward.1} parent=1 // pred_check
      _
    $region123: #{cvae_dnn_liner_forward.1} parent=1 // pred_check_branch
      %1471 = sbr.rel (0) target = $region125
    $region124: #{cvae_dnn_liner_forward.1} parent=1 // pred_region
      %1472 = dma.done [#allocation4], 256
    $region125: #{cvae_dnn_liner_forward.1} parent=1 // pred_fallthru
      _
    // Predicated region
    $region126: #{cvae_dnn_liner_forward.1} parent=1 // pred_check
      _
    $region127: #{cvae_dnn_liner_forward.1} parent=1 // pred_check_branch
      %1474 = sbr.rel (0) target = $region129
    $region128: #{cvae_dnn_liner_forward.1} parent=1 // pred_region
      _
    $region129: #{cvae_dnn_liner_forward.1} parent=1 // pred_fallthru
      _
    %1475 = vsyncpa [#allocation3], 1
    %1476 = vsyncpa [#allocation6], 1
    %1477 = vsyncpa [#allocation9], 1
    %1478 = vsyncpa [#allocation12], 1
    %1479 = vsyncpa [#allocation15], 1
    %1480 = vsyncpa [#allocation18], 1
    %1481 = vsyncpa [#allocation4], 1

</llo_original>
